<compile_context>
chip_gen: v6e
topology: v6e:2x2x1
jax: 0.10.0
libtpu: 0.0.40
codegen_flags: <defaults>
</compile_context>

<pallas_src>
import functools
import math

import jax
import jax.numpy as jnp
from jax.experimental import pallas as pl
from jax.experimental.pallas import tpu as pltpu


def _round_up(v, m):
    return ((v + m - 1) // m) * m


def _choose_split(dim, tile_max, tile_min=512):
    """Split `dim` into n equal tiles (multiples of 128, <= tile_max),
    minimizing the padded size n*tile (padded HBM bytes are pure wall time);
    ties go to fewer, larger tiles.  Returns (padded, tile, n)."""
    dim128 = _round_up(dim, 128)
    if dim128 <= tile_max:
        return dim128, dim128, 1
    best = None
    n = 1
    while True:
        tile = _round_up((dim + n - 1) // n, 128)
        if tile <= tile_max:
            padded = n * tile
            if best is None or padded < best[0]:
                best = (padded, tile, n)
            if padded == dim128:  # zero extra padding: cannot do better
                break
        if tile <= max(128, tile_min) and best is not None:
            break
        if tile <= 128:
            break
        n += 1
    return best


def _hw_budgets():
    """Per-generation tile / VMEM budgets.

    Conservative defaults are safe everywhere (v7x: 64 MiB physical VMEM,
    working set ~28 MB).  On 128 MiB parts (v5e/v6e) we grow the W tile
    (tn_max=2048) and raise the scoped-VMEM limit to halve the number of
    grid steps on the big layers."""
    tk_max, tn_max, vmem_limit = 5248, 1024, 48 * 1024 * 1024
    try:
        info = pltpu.get_tpu_info()
        if getattr(info, "vmem_capacity_bytes", 0) >= 128 * 1024 * 1024:
            tn_max, vmem_limit = 2048, 96 * 1024 * 1024
    except Exception:
        pass  # conservative fallback works on every generation
    return tk_max, tn_max, vmem_limit


# ---------------------------------------------------------------------------
# Kernel: one (i, j, k) grid step of y = relu?(x @ W + b).
#   x_ref : (tm, Kp)        activations, resident in VMEM across the grid
#   w_ref : (1, 1, tk, tn)  pre-tiled weight block (one contiguous HBM burst)
#   b_ref : (1, tn)         bias tile
#   o_ref : (tm, tn) f32    output tile; doubles as the K-axis accumulator
# ---------------------------------------------------------------------------
def _linear_kernel(x_ref, w_ref, b_ref, o_ref, *, apply_relu, tk):
    k = pl.program_id(2)
    start = pl.multiple_of(k * tk, 128)
    partial = jnp.dot(
        x_ref[:, pl.ds(start, tk)], w_ref[0, 0],
        preferred_element_type=jnp.float32,
    )

    @pl.when(k == 0)
    def _first():
        o_ref[...] = partial

    @pl.when(k > 0)
    def _accumulate():
        o_ref[...] += partial

    @pl.when(k == pl.num_programs(2) - 1)
    def _finalize():
        out = o_ref[...] + b_ref[...]  # bias broadcast over rows
        if apply_relu:
            out = jnp.maximum(out, 0.0)
        o_ref[...] = out


def linear_pallas(x, wp, bp, cfg, *, apply_relu, vmem_limit_bytes):
    """y = relu?(x @ w + b).

    x  : (M, K) float32 activations (unpadded).
    wp : (nk, nj, tk, tn) bf16 weight, padded + tile-major at init.
    bp : (1, Np) float32 bias, zero-padded at init.
    cfg: static (K, N, Kp, Np, tk, tn, nk, nj).
    """
    K, N, Kp, Np, tk, tn, nk, nj = cfg
    M = x.shape[0]
    assert x.shape[1] == K
    Mp = _round_up(M, 32)  # 32: clean bf16 sublane packing, f32-friendly
    tm = Mp                # batch is tiny -> single M tile

    # Pad batch/K (cheap: activations are a few MB at most) and cast to the
    # weight dtype for the MXU; padded columns hit zero-padded W rows.
    xp = jnp.pad(x, ((0, Mp - M), (0, Kp - K))).astype(wp.dtype)

    out = pl.pallas_call(
        functools.partial(_linear_kernel, apply_relu=apply_relu, tk=tk),
        out_shape=jax.ShapeDtypeStruct((Mp, Np), jnp.float32),
        grid_spec=pltpu.PrefetchScalarGridSpec(
            num_scalar_prefetch=0,
            grid=(Mp // tm, nj, nk),
            in_specs=[
                # Activations: one block covering the whole array -> loaded
                # once, resident in VMEM; kernel slices the K chunk itself.
                pl.BlockSpec((tm, Kp), lambda i, j, k: (i, 0)),
                # Weights: the only HBM stream; tile-major -> contiguous DMA.
                pl.BlockSpec((1, 1, tk, tn), lambda i, j, k: (k, j, 0, 0)),
                # Bias.
                pl.BlockSpec((1, tn), lambda i, j, k: (0, j)),
            ],
            out_specs=pl.BlockSpec((tm, tn), lambda i, j, k: (i, j)),
        ),
        compiler_params=pltpu.CompilerParams(
            dimension_semantics=("parallel", "parallel", "arbitrary"),
            vmem_limit_bytes=vmem_limit_bytes,
        ),
    )(xp, wp, bp)

    return out[:M, :N]


# ---------------------------------------------------------------------------
# Model: init (pre-padded, pre-tiled bf16 weights) + jitted forward.
# ---------------------------------------------------------------------------
FULL_DIMS = (47192, 10000, 1000, 100, 4)  # the original PyTorch model
FULL_BATCH = 20
# TODO(synk): CrossEntropyLoss / Adam optimizer / training loop from the
# PyTorch module are training-side and not part of the forward pass.


def build_model(dims, *, weight_dtype=jnp.bfloat16):
    """Returns (init_params, jitted_forward, layer_cfg) for an MLP with the
    given dims and ReLU after every layer except the last."""
    tk_max, tn_max, vmem_limit = _hw_budgets()
    layer_cfg = []
    for i in range(len(dims) - 1):
        K, N = dims[i], dims[i + 1]
        Kp, tk, nk = _choose_split(K, tk_max, tile_min=512)
        Np, tn, nj = _choose_split(N, tn_max, tile_min=256)
        layer_cfg.append((K, N, Kp, Np, tk, tn, nk, nj))
    n_layers = len(layer_cfg)

    def init_params(key):
        """nn.Linear-style U(-1/sqrt(fan_in), 1/sqrt(fan_in)) init.

        Weights are stored (in, out)-major, zero-padded to tile multiples and
        re-laid-out tile-major (nk, nj, tk, tn) ONCE here, cast to bf16, so
        the hot path streams each W tile as one contiguous burst."""
        params = []
        for (K, N, Kp, Np, tk, tn, nk, nj) in layer_cfg:
            key, kw, kb = jax.random.split(key, 3)
            bound = 1.0 / math.sqrt(K)
            w = jax.random.uniform(
                kw, (K, N), jnp.float32, minval=-bound, maxval=bound)
            b = jax.random.uniform(
                kb, (N,), jnp.float32, minval=-bound, maxval=bound)
            wp = jnp.pad(w, ((0, Kp - K), (0, Np - N))).astype(weight_dtype)
            wp = wp.reshape(nk, tk, nj, tn).transpose(0, 2, 1, 3)
            bp = jnp.pad(b, (0, Np - N)).reshape(1, Np).astype(jnp.float32)
            params.append((wp, bp))
        return params

    @jax.jit
    def forward(params, x):
        h = x
        for idx, ((wp, bp), cfg) in enumerate(zip(params, layer_cfg)):
            h = linear_pallas(h, wp, bp, cfg,
                              apply_relu=(idx < n_layers - 1),
                              vmem_limit_bytes=vmem_limit)
        return h

    return init_params, forward, layer_cfg


def forward_ref(params, x, layer_cfg):
    """Pure-JAX reference using the same stored (bf16, tile-major) params."""
    h = x
    n_layers = len(layer_cfg)
    for idx, ((wp, bp), (K, N, Kp, Np, tk, tn, nk, nj)) in enumerate(
            zip(params, layer_cfg)):
        w = wp.transpose(0, 2, 1, 3).reshape(Kp, Np)[:K, :N]
        b = bp[0, :N]
        y = jnp.dot(h.astype(wp.dtype), w,
                    preferred_element_type=jnp.float32) + b
        h = jnp.maximum(y, 0.0) if idx < n_layers - 1 else y
    return h


if __name__ == "__main__":
    # Small-shape self-test: same architecture scaled down so it finishes in
    # seconds.  Dims deliberately NOT multiples of 8/128 to exercise every
    # padding path; the full 47192-dim model uses the identical code.
    dims = (300, 200, 150, 70, 4)
    batch = 5

    init_params, forward, layer_cfg = build_model(dims)

    key = jax.random.PRNGKey(0)
    key, kx = jax.random.split(key)
    params = init_params(key)
    x = jax.random.normal(kx, (batch, dims[0]), jnp.float32)

    logits = jax.block_until_ready(forward(params, x))
    assert logits.shape == (batch, dims[-1])
    assert logits.dtype == jnp.float32

    ref = jax.block_until_ready(forward_ref(params, x, layer_cfg))
    max_err = float(jnp.max(jnp.abs(logits - ref)))
    assert jnp.allclose(logits, ref, rtol=1e-2, atol=1e-2), max_err

    print("KERNEL_OK")
</pallas_src>

<mosaic_0001>
module attributes {stable_mosaic.version = 11 : i64} {
  func.func @_linear_kernel(%arg0: i32, %arg1: i32, %arg2: i32, %arg3: memref<32x384xbf16, #tpu.memory_space<vmem>>, %arg4: memref<1x1x384x256xbf16, #tpu.memory_space<vmem>>, %arg5: memref<1x256xf32, #tpu.memory_space<vmem>>, %arg6: memref<32x256xf32, #tpu.memory_space<vmem>>) attributes {dimension_semantics = [#tpu.dimension_semantics<parallel>, #tpu.dimension_semantics<parallel>, #tpu.dimension_semantics<arbitrary>], iteration_bounds = array<i64: 1, 1, 1>, scalar_prefetch = 0 : i64, scratch_operands = 0 : i64, tpu.core_type = #tpu.core_type<tc>, window_params = [{transform_indices = @transform_0, window_bounds = array<i64: 32, 384>}, {transform_indices = @transform_1, window_bounds = array<i64: 1, 1, 384, 256>}, {transform_indices = @transform_2, window_bounds = array<i64: 1, 256>}, {transform_indices = @transform_3, window_bounds = array<i64: 32, 256>}]} {
    %c384_i32 = arith.constant 384 : i32
    %0 = arith.muli %arg2, %c384_i32 : i32
    %1 = tpu.assume_multiple %0, 128 : i32
    %c0 = arith.constant 0 : index
    %2 = arith.index_cast %1 : i32 to index
    %3 = vector.load %arg3[%c0, %2] : memref<32x384xbf16, #tpu.memory_space<vmem>>, vector<32x384xbf16>
    %c0_0 = arith.constant 0 : index
    %c0_1 = arith.constant 0 : index
    %c0_2 = arith.constant 0 : index
    %c0_3 = arith.constant 0 : index
    %4 = vector.load %arg4[%c0_0, %c0_1, %c0_2, %c0_3] : memref<1x1x384x256xbf16, #tpu.memory_space<vmem>>, vector<1x1x384x256xbf16>
    %5 = vector.shape_cast %4 : vector<1x1x384x256xbf16> to vector<384x256xbf16>
    %cst = arith.constant dense<0.000000e+00> : vector<32x256xf32>
    %6 = tpu.matmul %3, %5, %cst {dimension_numbers = #tpu.dot_dimension_numbers<[1], [0], [0], [1], [0, 0, 1, 1], [], []>} : vector<32x384xbf16>, vector<384x256xbf16>, vector<32x256xf32> -> vector<32x256xf32>
    %c0_i32 = arith.constant 0 : i32
    %7 = arith.cmpi eq, %arg2, %c0_i32 : i32
    %8 = arith.extui %7 : i1 to i32
    %c0_i32_4 = arith.constant 0 : i32
    %9 = arith.cmpi ne, %8, %c0_i32_4 : i32
    scf.if %9 {
      %c0_9 = arith.constant 0 : index
      %c0_10 = arith.constant 0 : index
      %16 = vector.load %arg6[%c0_9, %c0_10] : memref<32x256xf32, #tpu.memory_space<vmem>>, vector<32x256xf32>
      tpu.vector_store %arg6[%c0_9, %c0_10], %6 {strides = array<i32>} : memref<32x256xf32, #tpu.memory_space<vmem>>, vector<32x256xf32>,
    } else {
    }
    %c0_i32_5 = arith.constant 0 : i32
    %10 = arith.cmpi sgt, %arg2, %c0_i32_5 : i32
    %11 = arith.extui %10 : i1 to i32
    %c0_i32_6 = arith.constant 0 : i32
    %12 = arith.cmpi ne, %11, %c0_i32_6 : i32
    scf.if %12 {
      %c0_9 = arith.constant 0 : index
      %c0_10 = arith.constant 0 : index
      %16 = vector.load %arg6[%c0_9, %c0_10] : memref<32x256xf32, #tpu.memory_space<vmem>>, vector<32x256xf32>
      %17 = arith.addf %16, %6 : vector<32x256xf32>
      %c0_11 = arith.constant 0 : index
      %c0_12 = arith.constant 0 : index
      %18 = vector.load %arg6[%c0_11, %c0_12] : memref<32x256xf32, #tpu.memory_space<vmem>>, vector<32x256xf32>
      tpu.vector_store %arg6[%c0_11, %c0_12], %17 {strides = array<i32>} : memref<32x256xf32, #tpu.memory_space<vmem>>, vector<32x256xf32>,
    } else {
    }
    %c0_i32_7 = arith.constant 0 : i32
    %13 = arith.cmpi eq, %arg2, %c0_i32_7 : i32
    %14 = arith.extui %13 : i1 to i32
    %c0_i32_8 = arith.constant 0 : i32
    %15 = arith.cmpi ne, %14, %c0_i32_8 : i32
    scf.if %15 {
      %c0_9 = arith.constant 0 : index
      %c0_10 = arith.constant 0 : index
      %16 = vector.load %arg6[%c0_9, %c0_10] : memref<32x256xf32, #tpu.memory_space<vmem>>, vector<32x256xf32>
      %c0_11 = arith.constant 0 : index
      %c0_12 = arith.constant 0 : index
      %17 = vector.load %arg5[%c0_11, %c0_12] : memref<1x256xf32, #tpu.memory_space<vmem>>, vector<1x256xf32>
      %18 = vector.broadcast %17 : vector<1x256xf32> to vector<32x256xf32>
      %19 = arith.addf %16, %18 : vector<32x256xf32>
      %cst_13 = arith.constant 0.000000e+00 : f32
      %20 = vector.broadcast %cst_13 : f32 to vector<32x256xf32>
      %21 = arith.maximumf %19, %20 : vector<32x256xf32>
      %c0_14 = arith.constant 0 : index
      %c0_15 = arith.constant 0 : index
      %22 = vector.load %arg6[%c0_14, %c0_15] : memref<32x256xf32, #tpu.memory_space<vmem>>, vector<32x256xf32>
      tpu.vector_store %arg6[%c0_14, %c0_15], %21 {strides = array<i32>} : memref<32x256xf32, #tpu.memory_space<vmem>>, vector<32x256xf32>,
    } else {
    }
    return
  }
  func.func @transform_0(%arg0: i32, %arg1: i32, %arg2: i32) -> (i32, i32) {
    %c0_i32 = arith.constant 0 : i32
    %c0_i32_0 = arith.constant 0 : i32
    return %arg0, %c0_i32 : i32, i32
  }
  func.func @transform_1(%arg0: i32, %arg1: i32, %arg2: i32) -> (i32, i32, i32, i32) {
    %c0_i32 = arith.constant 0 : i32
    %c0_i32_0 = arith.constant 0 : i32
    %c0_i32_1 = arith.constant 0 : i32
    return %arg2, %arg1, %c0_i32, %c0_i32_0 : i32, i32, i32, i32
  }
  func.func @transform_2(%arg0: i32, %arg1: i32, %arg2: i32) -> (i32, i32) {
    %c0_i32 = arith.constant 0 : i32
    %c0_i32_0 = arith.constant 0 : i32
    return %c0_i32, %arg1 : i32, i32
  }
  func.func @transform_3(%arg0: i32, %arg1: i32, %arg2: i32) -> (i32, i32) {
    %c0_i32 = arith.constant 0 : i32
    return %arg0, %arg1 : i32, i32
  }
}

module attributes {stable_mosaic.version = 11 : i64} {
  func.func @_linear_kernel(%arg0: i32, %arg1: i32, %arg2: i32, %arg3: memref<32x256xbf16, #tpu.memory_space<vmem>>, %arg4: memref<1x1x256x128xbf16, #tpu.memory_space<vmem>>, %arg5: memref<1x128xf32, #tpu.memory_space<vmem>>, %arg6: memref<32x128xf32, #tpu.memory_space<vmem>>) attributes {dimension_semantics = [#tpu.dimension_semantics<parallel>, #tpu.dimension_semantics<parallel>, #tpu.dimension_semantics<arbitrary>], iteration_bounds = array<i64: 1, 1, 1>, scalar_prefetch = 0 : i64, scratch_operands = 0 : i64, tpu.core_type = #tpu.core_type<tc>, window_params = [{transform_indices = @transform_0, window_bounds = array<i64: 32, 256>}, {transform_indices = @transform_1, window_bounds = array<i64: 1, 1, 256, 128>}, {transform_indices = @transform_2, window_bounds = array<i64: 1, 128>}, {transform_indices = @transform_3, window_bounds = array<i64: 32, 128>}]} {
    %c256_i32 = arith.constant 256 : i32
    %0 = arith.muli %arg2, %c256_i32 : i32
    %1 = tpu.assume_multiple %0, 128 : i32
    %c0 = arith.constant 0 : index
    %2 = arith.index_cast %1 : i32 to index
    %3 = vector.load %arg3[%c0, %2] : memref<32x256xbf16, #tpu.memory_space<vmem>>, vector<32x256xbf16>
    %c0_0 = arith.constant 0 : index
    %c0_1 = arith.constant 0 : index
    %c0_2 = arith.constant 0 : index
    %c0_3 = arith.constant 0 : index
    %4 = vector.load %arg4[%c0_0, %c0_1, %c0_2, %c0_3] : memref<1x1x256x128xbf16, #tpu.memory_space<vmem>>, vector<1x1x256x128xbf16>
    %5 = vector.shape_cast %4 : vector<1x1x256x128xbf16> to vector<256x128xbf16>
    %cst = arith.constant dense<0.000000e+00> : vector<32x128xf32>
    %6 = tpu.matmul %3, %5, %cst {dimension_numbers = #tpu.dot_dimension_numbers<[1], [0], [0], [1], [0, 0, 1, 1], [], []>} : vector<32x256xbf16>, vector<256x128xbf16>, vector<32x128xf32> -> vector<32x128xf32>
    %c0_i32 = arith.constant 0 : i32
    %7 = arith.cmpi eq, %arg2, %c0_i32 : i32
    %8 = arith.extui %7 : i1 to i32
    %c0_i32_4 = arith.constant 0 : i32
    %9 = arith.cmpi ne, %8, %c0_i32_4 : i32
    scf.if %9 {
      %c0_9 = arith.constant 0 : index
      %c0_10 = arith.constant 0 : index
      %16 = vector.load %arg6[%c0_9, %c0_10] : memref<32x128xf32, #tpu.memory_space<vmem>>, vector<32x128xf32>
      tpu.vector_store %arg6[%c0_9, %c0_10], %6 {strides = array<i32>} : memref<32x128xf32, #tpu.memory_space<vmem>>, vector<32x128xf32>,
    } else {
    }
    %c0_i32_5 = arith.constant 0 : i32
    %10 = arith.cmpi sgt, %arg2, %c0_i32_5 : i32
    %11 = arith.extui %10 : i1 to i32
    %c0_i32_6 = arith.constant 0 : i32
    %12 = arith.cmpi ne, %11, %c0_i32_6 : i32
    scf.if %12 {
      %c0_9 = arith.constant 0 : index
      %c0_10 = arith.constant 0 : index
      %16 = vector.load %arg6[%c0_9, %c0_10] : memref<32x128xf32, #tpu.memory_space<vmem>>, vector<32x128xf32>
      %17 = arith.addf %16, %6 : vector<32x128xf32>
      %c0_11 = arith.constant 0 : index
      %c0_12 = arith.constant 0 : index
      %18 = vector.load %arg6[%c0_11, %c0_12] : memref<32x128xf32, #tpu.memory_space<vmem>>, vector<32x128xf32>
      tpu.vector_store %arg6[%c0_11, %c0_12], %17 {strides = array<i32>} : memref<32x128xf32, #tpu.memory_space<vmem>>, vector<32x128xf32>,
    } else {
    }
    %c0_i32_7 = arith.constant 0 : i32
    %13 = arith.cmpi eq, %arg2, %c0_i32_7 : i32
    %14 = arith.extui %13 : i1 to i32
    %c0_i32_8 = arith.constant 0 : i32
    %15 = arith.cmpi ne, %14, %c0_i32_8 : i32
    scf.if %15 {
      %c0_9 = arith.constant 0 : index
      %c0_10 = arith.constant 0 : index
      %16 = vector.load %arg6[%c0_9, %c0_10] : memref<32x128xf32, #tpu.memory_space<vmem>>, vector<32x128xf32>
      %c0_11 = arith.constant 0 : index
      %c0_12 = arith.constant 0 : index
      %17 = vector.load %arg5[%c0_11, %c0_12] : memref<1x128xf32, #tpu.memory_space<vmem>>, vector<1x128xf32>
      %18 = vector.broadcast %17 : vector<1x128xf32> to vector<32x128xf32>
      %19 = arith.addf %16, %18 : vector<32x128xf32>
      %cst_13 = arith.constant 0.000000e+00 : f32
      %20 = vector.broadcast %cst_13 : f32 to vector<32x128xf32>
      %21 = arith.maximumf %19, %20 : vector<32x128xf32>
      %c0_14 = arith.constant 0 : index
      %c0_15 = arith.constant 0 : index
      %22 = vector.load %arg6[%c0_14, %c0_15] : memref<32x128xf32, #tpu.memory_space<vmem>>, vector<32x128xf32>
      tpu.vector_store %arg6[%c0_14, %c0_15], %21 {strides = array<i32>} : memref<32x128xf32, #tpu.memory_space<vmem>>, vector<32x128xf32>,
    } else {
    }
    return
  }
  func.func @transform_0(%arg0: i32, %arg1: i32, %arg2: i32) -> (i32, i32) {
    %c0_i32 = arith.constant 0 : i32
    %c0_i32_0 = arith.constant 0 : i32
    return %arg0, %c0_i32 : i32, i32
  }
  func.func @transform_1(%arg0: i32, %arg1: i32, %arg2: i32) -> (i32, i32, i32, i32) {
    %c0_i32 = arith.constant 0 : i32
    %c0_i32_0 = arith.constant 0 : i32
    %c0_i32_1 = arith.constant 0 : i32
    return %arg2, %arg1, %c0_i32, %c0_i32_0 : i32, i32, i32, i32
  }
  func.func @transform_2(%arg0: i32, %arg1: i32, %arg2: i32) -> (i32, i32) {
    %c0_i32 = arith.constant 0 : i32
    %c0_i32_0 = arith.constant 0 : i32
    return %c0_i32, %arg1 : i32, i32
  }
  func.func @transform_3(%arg0: i32, %arg1: i32, %arg2: i32) -> (i32, i32) {
    %c0_i32 = arith.constant 0 : i32
    return %arg0, %arg1 : i32, i32
  }
}

module attributes {stable_mosaic.version = 11 : i64} {
  func.func @_linear_kernel(%arg0: i32, %arg1: i32, %arg2: i32, %arg3: memref<32x256xbf16, #tpu.memory_space<vmem>>, %arg4: memref<1x1x256x256xbf16, #tpu.memory_space<vmem>>, %arg5: memref<1x256xf32, #tpu.memory_space<vmem>>, %arg6: memref<32x256xf32, #tpu.memory_space<vmem>>) attributes {dimension_semantics = [#tpu.dimension_semantics<parallel>, #tpu.dimension_semantics<parallel>, #tpu.dimension_semantics<arbitrary>], iteration_bounds = array<i64: 1, 1, 1>, scalar_prefetch = 0 : i64, scratch_operands = 0 : i64, tpu.core_type = #tpu.core_type<tc>, window_params = [{transform_indices = @transform_0, window_bounds = array<i64: 32, 256>}, {transform_indices = @transform_1, window_bounds = array<i64: 1, 1, 256, 256>}, {transform_indices = @transform_2, window_bounds = array<i64: 1, 256>}, {transform_indices = @transform_3, window_bounds = array<i64: 32, 256>}]} {
    %c256_i32 = arith.constant 256 : i32
    %0 = arith.muli %arg2, %c256_i32 : i32
    %1 = tpu.assume_multiple %0, 128 : i32
    %c0 = arith.constant 0 : index
    %2 = arith.index_cast %1 : i32 to index
    %3 = vector.load %arg3[%c0, %2] : memref<32x256xbf16, #tpu.memory_space<vmem>>, vector<32x256xbf16>
    %c0_0 = arith.constant 0 : index
    %c0_1 = arith.constant 0 : index
    %c0_2 = arith.constant 0 : index
    %c0_3 = arith.constant 0 : index
    %4 = vector.load %arg4[%c0_0, %c0_1, %c0_2, %c0_3] : memref<1x1x256x256xbf16, #tpu.memory_space<vmem>>, vector<1x1x256x256xbf16>
    %5 = vector.shape_cast %4 : vector<1x1x256x256xbf16> to vector<256x256xbf16>
    %cst = arith.constant dense<0.000000e+00> : vector<32x256xf32>
    %6 = tpu.matmul %3, %5, %cst {dimension_numbers = #tpu.dot_dimension_numbers<[1], [0], [0], [1], [0, 0, 1, 1], [], []>} : vector<32x256xbf16>, vector<256x256xbf16>, vector<32x256xf32> -> vector<32x256xf32>
    %c0_i32 = arith.constant 0 : i32
    %7 = arith.cmpi eq, %arg2, %c0_i32 : i32
    %8 = arith.extui %7 : i1 to i32
    %c0_i32_4 = arith.constant 0 : i32
    %9 = arith.cmpi ne, %8, %c0_i32_4 : i32
    scf.if %9 {
      %c0_9 = arith.constant 0 : index
      %c0_10 = arith.constant 0 : index
      %16 = vector.load %arg6[%c0_9, %c0_10] : memref<32x256xf32, #tpu.memory_space<vmem>>, vector<32x256xf32>
      tpu.vector_store %arg6[%c0_9, %c0_10], %6 {strides = array<i32>} : memref<32x256xf32, #tpu.memory_space<vmem>>, vector<32x256xf32>,
    } else {
    }
    %c0_i32_5 = arith.constant 0 : i32
    %10 = arith.cmpi sgt, %arg2, %c0_i32_5 : i32
    %11 = arith.extui %10 : i1 to i32
    %c0_i32_6 = arith.constant 0 : i32
    %12 = arith.cmpi ne, %11, %c0_i32_6 : i32
    scf.if %12 {
      %c0_9 = arith.constant 0 : index
      %c0_10 = arith.constant 0 : index
      %16 = vector.load %arg6[%c0_9, %c0_10] : memref<32x256xf32, #tpu.memory_space<vmem>>, vector<32x256xf32>
      %17 = arith.addf %16, %6 : vector<32x256xf32>
      %c0_11 = arith.constant 0 : index
      %c0_12 = arith.constant 0 : index
      %18 = vector.load %arg6[%c0_11, %c0_12] : memref<32x256xf32, #tpu.memory_space<vmem>>, vector<32x256xf32>
      tpu.vector_store %arg6[%c0_11, %c0_12], %17 {strides = array<i32>} : memref<32x256xf32, #tpu.memory_space<vmem>>, vector<32x256xf32>,
    } else {
    }
    %c0_i32_7 = arith.constant 0 : i32
    %13 = arith.cmpi eq, %arg2, %c0_i32_7 : i32
    %14 = arith.extui %13 : i1 to i32
    %c0_i32_8 = arith.constant 0 : i32
    %15 = arith.cmpi ne, %14, %c0_i32_8 : i32
    scf.if %15 {
      %c0_9 = arith.constant 0 : index
      %c0_10 = arith.constant 0 : index
      %16 = vector.load %arg6[%c0_9, %c0_10] : memref<32x256xf32, #tpu.memory_space<vmem>>, vector<32x256xf32>
      %c0_11 = arith.constant 0 : index
      %c0_12 = arith.constant 0 : index
      %17 = vector.load %arg5[%c0_11, %c0_12] : memref<1x256xf32, #tpu.memory_space<vmem>>, vector<1x256xf32>
      %18 = vector.broadcast %17 : vector<1x256xf32> to vector<32x256xf32>
      %19 = arith.addf %16, %18 : vector<32x256xf32>
      %cst_13 = arith.constant 0.000000e+00 : f32
      %20 = vector.broadcast %cst_13 : f32 to vector<32x256xf32>
      %21 = arith.maximumf %19, %20 : vector<32x256xf32>
      %c0_14 = arith.constant 0 : index
      %c0_15 = arith.constant 0 : index
      %22 = vector.load %arg6[%c0_14, %c0_15] : memref<32x256xf32, #tpu.memory_space<vmem>>, vector<32x256xf32>
      tpu.vector_store %arg6[%c0_14, %c0_15], %21 {strides = array<i32>} : memref<32x256xf32, #tpu.memory_space<vmem>>, vector<32x256xf32>,
    } else {
    }
    return
  }
  func.func @transform_0(%arg0: i32, %arg1: i32, %arg2: i32) -> (i32, i32) {
    %c0_i32 = arith.constant 0 : i32
    %c0_i32_0 = arith.constant 0 : i32
    return %arg0, %c0_i32 : i32, i32
  }
  func.func @transform_1(%arg0: i32, %arg1: i32, %arg2: i32) -> (i32, i32, i32, i32) {
    %c0_i32 = arith.constant 0 : i32
    %c0_i32_0 = arith.constant 0 : i32
    %c0_i32_1 = arith.constant 0 : i32
    return %arg2, %arg1, %c0_i32, %c0_i32_0 : i32, i32, i32, i32
  }
  func.func @transform_2(%arg0: i32, %arg1: i32, %arg2: i32) -> (i32, i32) {
    %c0_i32 = arith.constant 0 : i32
    %c0_i32_0 = arith.constant 0 : i32
    return %c0_i32, %arg1 : i32, i32
  }
  func.func @transform_3(%arg0: i32, %arg1: i32, %arg2: i32) -> (i32, i32) {
    %c0_i32 = arith.constant 0 : i32
    return %arg0, %arg1 : i32, i32
  }
}

module attributes {stable_mosaic.version = 11 : i64} {
  func.func @_linear_kernel(%arg0: i32, %arg1: i32, %arg2: i32, %arg3: memref<32x128xbf16, #tpu.memory_space<vmem>>, %arg4: memref<1x1x128x128xbf16, #tpu.memory_space<vmem>>, %arg5: memref<1x128xf32, #tpu.memory_space<vmem>>, %arg6: memref<32x128xf32, #tpu.memory_space<vmem>>) attributes {dimension_semantics = [#tpu.dimension_semantics<parallel>, #tpu.dimension_semantics<parallel>, #tpu.dimension_semantics<arbitrary>], iteration_bounds = array<i64: 1, 1, 1>, scalar_prefetch = 0 : i64, scratch_operands = 0 : i64, tpu.core_type = #tpu.core_type<tc>, window_params = [{transform_indices = @transform_0, window_bounds = array<i64: 32, 128>}, {transform_indices = @transform_1, window_bounds = array<i64: 1, 1, 128, 128>}, {transform_indices = @transform_2, window_bounds = array<i64: 1, 128>}, {transform_indices = @transform_3, window_bounds = array<i64: 32, 128>}]} {
    %c128_i32 = arith.constant 128 : i32
    %0 = arith.muli %arg2, %c128_i32 : i32
    %1 = tpu.assume_multiple %0, 128 : i32
    %c0 = arith.constant 0 : index
    %2 = arith.index_cast %1 : i32 to index
    %3 = vector.load %arg3[%c0, %2] : memref<32x128xbf16, #tpu.memory_space<vmem>>, vector<32x128xbf16>
    %c0_0 = arith.constant 0 : index
    %c0_1 = arith.constant 0 : index
    %c0_2 = arith.constant 0 : index
    %c0_3 = arith.constant 0 : index
    %4 = vector.load %arg4[%c0_0, %c0_1, %c0_2, %c0_3] : memref<1x1x128x128xbf16, #tpu.memory_space<vmem>>, vector<1x1x128x128xbf16>
    %5 = vector.shape_cast %4 : vector<1x1x128x128xbf16> to vector<128x128xbf16>
    %cst = arith.constant dense<0.000000e+00> : vector<32x128xf32>
    %6 = tpu.matmul %3, %5, %cst {dimension_numbers = #tpu.dot_dimension_numbers<[1], [0], [0], [1], [0, 0, 1, 1], [], []>} : vector<32x128xbf16>, vector<128x128xbf16>, vector<32x128xf32> -> vector<32x128xf32>
    %c0_i32 = arith.constant 0 : i32
    %7 = arith.cmpi eq, %arg2, %c0_i32 : i32
    %8 = arith.extui %7 : i1 to i32
    %c0_i32_4 = arith.constant 0 : i32
    %9 = arith.cmpi ne, %8, %c0_i32_4 : i32
    scf.if %9 {
      %c0_9 = arith.constant 0 : index
      %c0_10 = arith.constant 0 : index
      %16 = vector.load %arg6[%c0_9, %c0_10] : memref<32x128xf32, #tpu.memory_space<vmem>>, vector<32x128xf32>
      tpu.vector_store %arg6[%c0_9, %c0_10], %6 {strides = array<i32>} : memref<32x128xf32, #tpu.memory_space<vmem>>, vector<32x128xf32>,
    } else {
    }
    %c0_i32_5 = arith.constant 0 : i32
    %10 = arith.cmpi sgt, %arg2, %c0_i32_5 : i32
    %11 = arith.extui %10 : i1 to i32
    %c0_i32_6 = arith.constant 0 : i32
    %12 = arith.cmpi ne, %11, %c0_i32_6 : i32
    scf.if %12 {
      %c0_9 = arith.constant 0 : index
      %c0_10 = arith.constant 0 : index
      %16 = vector.load %arg6[%c0_9, %c0_10] : memref<32x128xf32, #tpu.memory_space<vmem>>, vector<32x128xf32>
      %17 = arith.addf %16, %6 : vector<32x128xf32>
      %c0_11 = arith.constant 0 : index
      %c0_12 = arith.constant 0 : index
      %18 = vector.load %arg6[%c0_11, %c0_12] : memref<32x128xf32, #tpu.memory_space<vmem>>, vector<32x128xf32>
      tpu.vector_store %arg6[%c0_11, %c0_12], %17 {strides = array<i32>} : memref<32x128xf32, #tpu.memory_space<vmem>>, vector<32x128xf32>,
    } else {
    }
    %c0_i32_7 = arith.constant 0 : i32
    %13 = arith.cmpi eq, %arg2, %c0_i32_7 : i32
    %14 = arith.extui %13 : i1 to i32
    %c0_i32_8 = arith.constant 0 : i32
    %15 = arith.cmpi ne, %14, %c0_i32_8 : i32
    scf.if %15 {
      %c0_9 = arith.constant 0 : index
      %c0_10 = arith.constant 0 : index
      %16 = vector.load %arg6[%c0_9, %c0_10] : memref<32x128xf32, #tpu.memory_space<vmem>>, vector<32x128xf32>
      %c0_11 = arith.constant 0 : index
      %c0_12 = arith.constant 0 : index
      %17 = vector.load %arg5[%c0_11, %c0_12] : memref<1x128xf32, #tpu.memory_space<vmem>>, vector<1x128xf32>
      %18 = vector.broadcast %17 : vector<1x128xf32> to vector<32x128xf32>
      %19 = arith.addf %16, %18 : vector<32x128xf32>
      %c0_13 = arith.constant 0 : index
      %c0_14 = arith.constant 0 : index
      %20 = vector.load %arg6[%c0_13, %c0_14] : memref<32x128xf32, #tpu.memory_space<vmem>>, vector<32x128xf32>
      tpu.vector_store %arg6[%c0_13, %c0_14], %19 {strides = array<i32>} : memref<32x128xf32, #tpu.memory_space<vmem>>, vector<32x128xf32>,
    } else {
    }
    return
  }
  func.func @transform_0(%arg0: i32, %arg1: i32, %arg2: i32) -> (i32, i32) {
    %c0_i32 = arith.constant 0 : i32
    %c0_i32_0 = arith.constant 0 : i32
    return %arg0, %c0_i32 : i32, i32
  }
  func.func @transform_1(%arg0: i32, %arg1: i32, %arg2: i32) -> (i32, i32, i32, i32) {
    %c0_i32 = arith.constant 0 : i32
    %c0_i32_0 = arith.constant 0 : i32
    %c0_i32_1 = arith.constant 0 : i32
    return %arg2, %arg1, %c0_i32, %c0_i32_0 : i32, i32, i32, i32
  }
  func.func @transform_2(%arg0: i32, %arg1: i32, %arg2: i32) -> (i32, i32) {
    %c0_i32 = arith.constant 0 : i32
    %c0_i32_0 = arith.constant 0 : i32
    return %c0_i32, %arg1 : i32, i32
  }
  func.func @transform_3(%arg0: i32, %arg1: i32, %arg2: i32) -> (i32, i32) {
    %c0_i32 = arith.constant 0 : i32
    return %arg0, %arg1 : i32, i32
  }
}

</mosaic_0001>

<llo_original>
// kernel: forward.4
$region0: #{forward.4}
  #allocation0 [shape = 'u32[]', space=smem, size = 0x4, offset = 0x4, fixed_abs, tag = 'smem constant byte address 0x4 - core index']
  #allocation1 [shape = 'u32[144,128]{1,0:T(1,128)}', space=vmem, size = 0x12000, scoped, tag = 'internal scratch']
  %s0 = inlined_call_operand.vmem [shape: bf16[32,384], index: 0, kind: input, shape index: {}]
  %s1 = inlined_call_operand.hbm [shape: bf16[1,1,384,256], index: 1, kind: input, shape index: {}]
  %s2 = inlined_call_operand.vmem [shape: f32[1,256], index: 2, kind: input, shape index: {}]
  %s3 = inlined_call_operand.vmem [shape: f32[32,256], index: 3, kind: output, shape index: {}]
  %s4 = sld [smem:[#allocation0]]
  $region38: #{forward.4} parent=0
    _
  %s6 = ssub.s32 1, %s4
  %s7 = scalar_select 0, %s6, %s4
  $region1: #{forward.4} parent=0
    #allocation2 [shape = 'u8[196608]{0}', space=vmem, size = 0x30000, scoped, tag = 'input window, operand 1, single buffered']
    #allocation3 [shape = 's32[1]{0}', space=sflag, size = 0x4, scoped, tag = 'scoped memory for forward.4']
    %8 = vsyncpa [#allocation3], 0
    // Predicated region
    $region2: #{forward.4} parent=1 // pred_check
      _
    $region3: #{forward.4} parent=1 // pred_check_branch
      %10 = sbr.rel (0) target = $region5
    $region4: #{forward.4} parent=1 // pred_region
      _
    $region5: #{forward.4} parent=1 // pred_fallthru
      _
    // Predicated region
    $region6: #{forward.4} parent=1 // pred_check
      _
    $region7: #{forward.4} parent=1 // pred_check_branch
      %12 = sbr.rel (0) target = $region9
    $region8: #{forward.4} parent=1 // pred_region
      %s14 = ssub.s32 6144, 6144
      %15 = vsyncadd [#allocation3], %s14
      %s16 = sshll.u32 [#allocation2], 4
      %s17 = int_to_ptr.vmem [resolvable:$true] %s16
      %22 = dma.hbm_to_vmem [thread:$0]  %s1, 6144, %s17, [#allocation3], 128, 128, 8
    $region9: #{forward.4} parent=1 // pred_fallthru
      _
    // Predicated region
    $region10: #{forward.4} parent=1 // pred_check
      _
    $region11: #{forward.4} parent=1 // pred_check_branch
      %24 = sbr.rel (0) target = $region13
    $region12: #{forward.4} parent=1 // pred_region
      _
    $region13: #{forward.4} parent=1 // pred_fallthru
      _
    // Predicated region
    $region14: #{forward.4} parent=1 // pred_check
      _
    $region15: #{forward.4} parent=1 // pred_check_branch
      %26 = sbr.rel (0) target = $region17
    $region16: #{forward.4} parent=1 // pred_region
      %27 = dma.done [#allocation3], 6144
    $region17: #{forward.4} parent=1 // pred_fallthru
      _
    %s29 = smul.u32 0, 384
    %s30 = sshra.s32 %s29, 7
    %s31 = sand.u32 %s29, 127
    %s32 = smul.addr %s30, 4
    %s33 = scalar_lea.vmem %s0, %s32
    %v34 = vld [vmem:[%s33] sm:$0xff]
    %v35 = vld [vmem:[%s33 + $0x8] sm:$0xf]
    %v36 = vld [vmem:[%s33 + $0xc] sm:$0xff]
    %v37 = vld [vmem:[%s33 + $0x14] sm:$0xf]
    %v38 = vld [vmem:[%s33 + $0x18] sm:$0xff]
    %v39 = vld [vmem:[%s33 + $0x20] sm:$0xf]
    %v40 = vld [vmem:[%s33 + $0x24] sm:$0xff]
    %v41 = vld [vmem:[%s33 + $0x2c] sm:$0xf]
    %v42 = vld [vmem:[#allocation2] sm:$0xff]
    %v43 = vld [vmem:[#allocation2 + $0x8] sm:$0xff]
    %v44 = vld [vmem:[#allocation2 + $0x10] sm:$0xff]
    %v45 = vld [vmem:[#allocation2 + $0x18] sm:$0xff]
    %v46 = vld [vmem:[#allocation2 + $0x20] sm:$0xff]
    %v47 = vld [vmem:[#allocation2 + $0x28] sm:$0xff]
    %v48 = vld [vmem:[#allocation2 + $0x30] sm:$0xff]
    %v49 = vld [vmem:[#allocation2 + $0x38] sm:$0xff]
    %v50 = vld [vmem:[#allocation2 + $0x40] sm:$0xff]
    %v51 = vld [vmem:[#allocation2 + $0x48] sm:$0xff]
    %v52 = vld [vmem:[#allocation2 + $0x50] sm:$0xff]
    %v53 = vld [vmem:[#allocation2 + $0x58] sm:$0xff]
    %v54 = vld [vmem:[#allocation2 + $0x60] sm:$0xff]
    %v55 = vld [vmem:[#allocation2 + $0x68] sm:$0xff]
    %v56 = vld [vmem:[#allocation2 + $0x70] sm:$0xff]
    %v57 = vld [vmem:[#allocation2 + $0x78] sm:$0xff]
    %v58 = vld [vmem:[#allocation2 + $0x80] sm:$0xff]
    %v59 = vld [vmem:[#allocation2 + $0x88] sm:$0xff]
    %v60 = vld [vmem:[#allocation2 + $0x90] sm:$0xff]
    %v61 = vld [vmem:[#allocation2 + $0x98] sm:$0xff]
    %v62 = vld [vmem:[#allocation2 + $0xa0] sm:$0xff]
    %v63 = vld [vmem:[#allocation2 + $0xa8] sm:$0xff]
    %v64 = vld [vmem:[#allocation2 + $0xb0] sm:$0xff]
    %v65 = vld [vmem:[#allocation2 + $0xb8] sm:$0xff]
    %v66 = vld [vmem:[#allocation2 + $0xc0] sm:$0xff]
    %v67 = vld [vmem:[#allocation2 + $0xc8] sm:$0xff]
    %v68 = vld [vmem:[#allocation2 + $0xd0] sm:$0xff]
    %v69 = vld [vmem:[#allocation2 + $0xd8] sm:$0xff]
    %v70 = vld [vmem:[#allocation2 + $0xe0] sm:$0xff]
    %v71 = vld [vmem:[#allocation2 + $0xe8] sm:$0xff]
    %v72 = vld [vmem:[#allocation2 + $0xf0] sm:$0xff]
    %v73 = vld [vmem:[#allocation2 + $0xf8] sm:$0xff]
    %v74 = vld [vmem:[#allocation2 + $0x100] sm:$0xff]
    %v75 = vld [vmem:[#allocation2 + $0x108] sm:$0xff]
    %v76 = vld [vmem:[#allocation2 + $0x110] sm:$0xff]
    %v77 = vld [vmem:[#allocation2 + $0x118] sm:$0xff]
    %v78 = vld [vmem:[#allocation2 + $0x120] sm:$0xff]
    %v79 = vld [vmem:[#allocation2 + $0x128] sm:$0xff]
    %v80 = vld [vmem:[#allocation2 + $0x130] sm:$0xff]
    %v81 = vld [vmem:[#allocation2 + $0x138] sm:$0xff]
    %v82 = vld [vmem:[#allocation2 + $0x140] sm:$0xff]
    %v83 = vld [vmem:[#allocation2 + $0x148] sm:$0xff]
    %v84 = vld [vmem:[#allocation2 + $0x150] sm:$0xff]
    %v85 = vld [vmem:[#allocation2 + $0x158] sm:$0xff]
    %v86 = vld [vmem:[#allocation2 + $0x160] sm:$0xff]
    %v87 = vld [vmem:[#allocation2 + $0x168] sm:$0xff]
    %v88 = vld [vmem:[#allocation2 + $0x170] sm:$0xff]
    %v89 = vld [vmem:[#allocation2 + $0x178] sm:$0xff]
    %v98 = vunpack.c.l.b16 %v34
    %v99 = vunpack.c.h.b16 %v34
    %v100 = vunpack.c.l.b16 %v35
    %v101 = vunpack.c.l.b16 %v36
    %v102 = vunpack.c.h.b16 %v36
    %v103 = vunpack.c.l.b16 %v37
    %v104 = vunpack.c.l.b16 %v38
    %v105 = vunpack.c.h.b16 %v38
    %v106 = vunpack.c.l.b16 %v39
    %v107 = vunpack.c.l.b16 %v40
    %v108 = vunpack.c.h.b16 %v40
    %v109 = vunpack.c.l.b16 %v41
    %v110 = vpack.c.b16 %v101, %v98
    %v111 = vpack.c.b16 %v102, %v99
    %v112 = vpack.c.b16 %v103, %v100
    %v113 = vpack.c.b16 %v107, %v104
    %v114 = vpack.c.b16 %v108, %v105
    %v115 = vpack.c.b16 %v109, %v106
    %v170 = vunpack.c.l.b16 %v42
    %v171 = vunpack.c.h.b16 %v42
    %v172 = vunpack.c.l.b16 %v43
    %v173 = vunpack.c.h.b16 %v43
    %v174 = vunpack.c.l.b16 %v44
    %v175 = vunpack.c.h.b16 %v44
    %v176 = vunpack.c.l.b16 %v45
    %v177 = vunpack.c.h.b16 %v45
    %v178 = vunpack.c.l.b16 %v46
    %v179 = vunpack.c.h.b16 %v46
    %v180 = vunpack.c.l.b16 %v47
    %v181 = vunpack.c.h.b16 %v47
    %v182 = vunpack.c.l.b16 %v48
    %v183 = vunpack.c.h.b16 %v48
    %v184 = vunpack.c.l.b16 %v49
    %v185 = vunpack.c.h.b16 %v49
    %v186 = vunpack.c.l.b16 %v50
    %v187 = vunpack.c.h.b16 %v50
    %v188 = vunpack.c.l.b16 %v51
    %v189 = vunpack.c.h.b16 %v51
    %v190 = vunpack.c.l.b16 %v52
    %v191 = vunpack.c.h.b16 %v52
    %v192 = vunpack.c.l.b16 %v53
    %v193 = vunpack.c.h.b16 %v53
    %v194 = vunpack.c.l.b16 %v54
    %v195 = vunpack.c.h.b16 %v54
    %v196 = vunpack.c.l.b16 %v55
    %v197 = vunpack.c.h.b16 %v55
    %v198 = vunpack.c.l.b16 %v56
    %v199 = vunpack.c.h.b16 %v56
    %v200 = vunpack.c.l.b16 %v57
    %v201 = vunpack.c.h.b16 %v57
    %v202 = vunpack.c.l.b16 %v58
    %v203 = vunpack.c.h.b16 %v58
    %v204 = vunpack.c.l.b16 %v59
    %v205 = vunpack.c.h.b16 %v59
    %v206 = vunpack.c.l.b16 %v60
    %v207 = vunpack.c.h.b16 %v60
    %v208 = vunpack.c.l.b16 %v61
    %v209 = vunpack.c.h.b16 %v61
    %v210 = vunpack.c.l.b16 %v62
    %v211 = vunpack.c.h.b16 %v62
    %v212 = vunpack.c.l.b16 %v63
    %v213 = vunpack.c.h.b16 %v63
    %v214 = vunpack.c.l.b16 %v64
    %v215 = vunpack.c.h.b16 %v64
    %v216 = vunpack.c.l.b16 %v65
    %v217 = vunpack.c.h.b16 %v65
    %v218 = vunpack.c.l.b16 %v66
    %v219 = vunpack.c.h.b16 %v66
    %v220 = vunpack.c.l.b16 %v67
    %v221 = vunpack.c.h.b16 %v67
    %v222 = vunpack.c.l.b16 %v68
    %v223 = vunpack.c.h.b16 %v68
    %v224 = vunpack.c.l.b16 %v69
    %v225 = vunpack.c.h.b16 %v69
    %v226 = vunpack.c.l.b16 %v70
    %v227 = vunpack.c.h.b16 %v70
    %v228 = vunpack.c.l.b16 %v71
    %v229 = vunpack.c.h.b16 %v71
    %v230 = vunpack.c.l.b16 %v72
    %v231 = vunpack.c.h.b16 %v72
    %v232 = vunpack.c.l.b16 %v73
    %v233 = vunpack.c.h.b16 %v73
    %v234 = vunpack.c.l.b16 %v74
    %v235 = vunpack.c.h.b16 %v74
    %v236 = vunpack.c.l.b16 %v75
    %v237 = vunpack.c.h.b16 %v75
    %v238 = vunpack.c.l.b16 %v76
    %v239 = vunpack.c.h.b16 %v76
    %v240 = vunpack.c.l.b16 %v77
    %v241 = vunpack.c.h.b16 %v77
    %v242 = vunpack.c.l.b16 %v78
    %v243 = vunpack.c.h.b16 %v78
    %v244 = vunpack.c.l.b16 %v79
    %v245 = vunpack.c.h.b16 %v79
    %v246 = vunpack.c.l.b16 %v80
    %v247 = vunpack.c.h.b16 %v80
    %v248 = vunpack.c.l.b16 %v81
    %v249 = vunpack.c.h.b16 %v81
    %v250 = vunpack.c.l.b16 %v82
    %v251 = vunpack.c.h.b16 %v82
    %v252 = vunpack.c.l.b16 %v83
    %v253 = vunpack.c.h.b16 %v83
    %v254 = vunpack.c.l.b16 %v84
    %v255 = vunpack.c.h.b16 %v84
    %v256 = vunpack.c.l.b16 %v85
    %v257 = vunpack.c.h.b16 %v85
    %v258 = vunpack.c.l.b16 %v86
    %v259 = vunpack.c.h.b16 %v86
    %v260 = vunpack.c.l.b16 %v87
    %v261 = vunpack.c.h.b16 %v87
    %v262 = vunpack.c.l.b16 %v88
    %v263 = vunpack.c.h.b16 %v88
    %v264 = vunpack.c.l.b16 %v89
    %v265 = vunpack.c.h.b16 %v89
    %v266 = vpack.c.b16 %v172, %v170
    %v267 = vpack.c.b16 %v173, %v171
    %v268 = vpack.c.b16 %v176, %v174
    %v269 = vpack.c.b16 %v177, %v175
    %v270 = vpack.c.b16 %v180, %v178
    %v271 = vpack.c.b16 %v181, %v179
    %v272 = vpack.c.b16 %v184, %v182
    %v273 = vpack.c.b16 %v185, %v183
    %v274 = vpack.c.b16 %v188, %v186
    %v275 = vpack.c.b16 %v189, %v187
    %v276 = vpack.c.b16 %v192, %v190
    %v277 = vpack.c.b16 %v193, %v191
    %v278 = vpack.c.b16 %v196, %v194
    %v279 = vpack.c.b16 %v197, %v195
    %v280 = vpack.c.b16 %v200, %v198
    %v281 = vpack.c.b16 %v201, %v199
    %v282 = vpack.c.b16 %v204, %v202
    %v283 = vpack.c.b16 %v205, %v203
    %v284 = vpack.c.b16 %v208, %v206
    %v285 = vpack.c.b16 %v209, %v207
    %v286 = vpack.c.b16 %v212, %v210
    %v287 = vpack.c.b16 %v213, %v211
    %v288 = vpack.c.b16 %v216, %v214
    %v289 = vpack.c.b16 %v217, %v215
    %v290 = vpack.c.b16 %v220, %v218
    %v291 = vpack.c.b16 %v221, %v219
    %v292 = vpack.c.b16 %v224, %v222
    %v293 = vpack.c.b16 %v225, %v223
    %v294 = vpack.c.b16 %v228, %v226
    %v295 = vpack.c.b16 %v229, %v227
    %v296 = vpack.c.b16 %v232, %v230
    %v297 = vpack.c.b16 %v233, %v231
    %v298 = vpack.c.b16 %v236, %v234
    %v299 = vpack.c.b16 %v237, %v235
    %v300 = vpack.c.b16 %v240, %v238
    %v301 = vpack.c.b16 %v241, %v239
    %v302 = vpack.c.b16 %v244, %v242
    %v303 = vpack.c.b16 %v245, %v243
    %v304 = vpack.c.b16 %v248, %v246
    %v305 = vpack.c.b16 %v249, %v247
    %v306 = vpack.c.b16 %v252, %v250
    %v307 = vpack.c.b16 %v253, %v251
    %v308 = vpack.c.b16 %v256, %v254
    %v309 = vpack.c.b16 %v257, %v255
    %v310 = vpack.c.b16 %v260, %v258
    %v311 = vpack.c.b16 %v261, %v259
    %v312 = vpack.c.b16 %v264, %v262
    %v313 = vpack.c.b16 %v265, %v263
    %362 = vmatprep.subr.bf16.mxu0 %v281
    %363 = vmatpush1.bf16.msra.mxu0 %v280
    %364 = vmatprep.subr.bf16.mxu0 %v279
    %365 = vmatpush1.bf16.msra.mxu0 %v278
    %366 = vmatprep.subr.bf16.mxu0 %v277
    %367 = vmatpush1.bf16.msra.mxu0 %v276
    %368 = vmatprep.subr.bf16.mxu0 %v275
    %369 = vmatpush1.bf16.msra.mxu0 %v274
    %370 = vmatprep.subr.bf16.mxu0 %v273
    %371 = vmatpush1.bf16.msra.mxu0 %v272
    %372 = vmatprep.subr.bf16.mxu0 %v271
    %373 = vmatpush1.bf16.msra.mxu0 %v270
    %374 = vmatprep.subr.bf16.mxu0 %v269
    %375 = vmatpush1.bf16.msra.mxu0 %v268
    %376 = vmatprep.subr.bf16.mxu0 %v267
    %377 = vmatpush1.bf16.msra.mxu0 %v266
    %378 = vmatprep.subr.bf16.mxu0 %v297
    %379 = vmatpush2.bf16.msra.mxu0 %v296
    %380 = vmatprep.subr.bf16.mxu0 %v295
    %381 = vmatpush2.bf16.msra.mxu0 %v294
    %382 = vmatprep.subr.bf16.mxu0 %v293
    %383 = vmatpush2.bf16.msra.mxu0 %v292
    %384 = vmatprep.subr.bf16.mxu0 %v291
    %385 = vmatpush2.bf16.msra.mxu0 %v290
    %386 = vmatprep.subr.bf16.mxu0 %v289
    %387 = vmatpush2.bf16.msra.mxu0 %v288
    %388 = vmatprep.subr.bf16.mxu0 %v287
    %389 = vmatpush2.bf16.msra.mxu0 %v286
    %390 = vmatprep.subr.bf16.mxu0 %v285
    %391 = vmatpush2.bf16.msra.mxu0 %v284
    %392 = vmatprep.subr.bf16.mxu0 %v283
    %393 = vmatpush2.bf16.msra.mxu0 %v282
    %394 = vmatprep.mubr.bf16.mxu0 %v111
    %395 = vmatmul.mubr.bf16.gmra.mxu0 %v110
    %v396 = vpop.f32.mrf.mxu0
    %v397 = vadd.f32 0.0, %v396
    %v398 = vpop.f32.mrf.mxu0
    %v399 = vadd.f32 0.0, %v398
    %v400 = vpop.f32.mrf.mxu0
    %v401 = vadd.f32 0.0, %v400
    %v402 = vpop.f32.mrf.mxu0
    %v403 = vadd.f32 0.0, %v402
    %404 = vmatprep.mubr.bf16.mxu0 %v114
    %405 = vmatmul.mubr.bf16.gmra.mxu0 %v113
    %v406 = vpop.f32.mrf.mxu0
    %v407 = vadd.f32 0.0, %v406
    %v408 = vpop.f32.mrf.mxu0
    %v409 = vadd.f32 0.0, %v408
    %v410 = vpop.f32.mrf.mxu0
    %v411 = vadd.f32 0.0, %v410
    %v412 = vpop.f32.mrf.mxu0
    %v413 = vadd.f32 0.0, %v412
    %414 = vdwg.mxu0
    %415 = vmatprep.subr.bf16.mxu0 %v313
    %416 = vmatpush1.bf16.msra.mxu0 %v312
    %417 = vmatprep.subr.bf16.mxu0 %v311
    %418 = vmatpush1.bf16.msra.mxu0 %v310
    %419 = vmatprep.subr.bf16.mxu0 %v309
    %420 = vmatpush1.bf16.msra.mxu0 %v308
    %421 = vmatprep.subr.bf16.mxu0 %v307
    %422 = vmatpush1.bf16.msra.mxu0 %v306
    %423 = vmatprep.subr.bf16.mxu0 %v305
    %424 = vmatpush1.bf16.msra.mxu0 %v304
    %425 = vmatprep.subr.bf16.mxu0 %v303
    %426 = vmatpush1.bf16.msra.mxu0 %v302
    %427 = vmatprep.subr.bf16.mxu0 %v301
    %428 = vmatpush1.bf16.msra.mxu0 %v300
    %429 = vmatprep.subr.bf16.mxu0 %v299
    %430 = vmatpush1.bf16.msra.mxu0 %v298
    %431 = vmatprep.subr.bf16.mxu0 0
    %432 = vmatpush2.bf16.msra.mxu0 0
    %433 = vmatprep.subr.bf16.mxu0 0
    %434 = vmatpush2.bf16.msra.mxu0 0
    %435 = vmatprep.subr.bf16.mxu0 0
    %436 = vmatpush2.bf16.msra.mxu0 0
    %437 = vmatprep.subr.bf16.mxu0 0
    %438 = vmatpush2.bf16.msra.mxu0 0
    %439 = vmatprep.subr.bf16.mxu0 0
    %440 = vmatpush2.bf16.msra.mxu0 0
    %441 = vmatprep.subr.bf16.mxu0 0
    %442 = vmatpush2.bf16.msra.mxu0 0
    %443 = vmatprep.subr.bf16.mxu0 0
    %444 = vmatpush2.bf16.msra.mxu0 0
    %445 = vmatprep.subr.bf16.mxu0 0
    %446 = vmatpush2.bf16.msra.mxu0 0
    %447 = vmatprep.mubr.bf16.mxu0 0
    %448 = vmatmul.mubr.bf16.gmra.mxu0 %v112
    %v449 = vpop.f32.mrf.mxu0
    %v450 = vadd.f32 %v397, %v449
    %v451 = vpop.f32.mrf.mxu0
    %v452 = vadd.f32 %v399, %v451
    %v453 = vpop.f32.mrf.mxu0
    %v454 = vadd.f32 %v401, %v453
    %v455 = vpop.f32.mrf.mxu0
    %v456 = vadd.f32 %v403, %v455
    %457 = vmatprep.mubr.bf16.mxu0 0
    %458 = vmatmul.mubr.bf16.gmra.mxu0 %v115
    %v459 = vpop.f32.mrf.mxu0
    %v460 = vadd.f32 %v407, %v459
    %v461 = vpop.f32.mrf.mxu0
    %v462 = vadd.f32 %v409, %v461
    %v463 = vpop.f32.mrf.mxu0
    %v464 = vadd.f32 %v411, %v463
    %v465 = vpop.f32.mrf.mxu0
    %v466 = vadd.f32 %v413, %v465
    %467 = vdwg.mxu0
    %p468 = scmp.eq.s32.totalorder 0, 0
    // Predicated region
    $region18: #{forward.4} parent=1 // pred_check
      %p469 = pneg %p468
    $region19: #{forward.4} parent=1 // pred_check_branch
      %471 = sbr.rel (%p469) target = $region21
    $region20: #{forward.4} parent=1 // pred_region
      %472 = vst [vmem:[%s3] sm:$0xff] %v450
      %473 = vst [vmem:[%s3 + $0x8] sm:$0xff] %v452
      %474 = vst [vmem:[%s3 + $0x10] sm:$0xff] %v454
      %475 = vst [vmem:[%s3 + $0x18] sm:$0xff] %v456
      %476 = vst [vmem:[%s3 + $0x20] sm:$0xff] %v460
      %477 = vst [vmem:[%s3 + $0x28] sm:$0xff] %v462
      %478 = vst [vmem:[%s3 + $0x30] sm:$0xff] %v464
      %479 = vst [vmem:[%s3 + $0x38] sm:$0xff] %v466
    $region21: #{forward.4} parent=1 // pred_fallthru
      _
    %p480 = scmp.gt.s32.totalorder 0, 0
    // Predicated region
    $region22: #{forward.4} parent=1 // pred_check
      %p481 = pneg %p480
    $region23: #{forward.4} parent=1 // pred_check_branch
      %483 = sbr.rel (%p481) target = $region25
    $region24: #{forward.4} parent=1 // pred_region
      %v484 = vld [vmem:[%s3] sm:$0xff]
      %v485 = vld [vmem:[%s3 + $0x8] sm:$0xff]
      %v486 = vld [vmem:[%s3 + $0x10] sm:$0xff]
      %v487 = vld [vmem:[%s3 + $0x18] sm:$0xff]
      %v488 = vld [vmem:[%s3 + $0x20] sm:$0xff]
      %v489 = vld [vmem:[%s3 + $0x28] sm:$0xff]
      %v490 = vld [vmem:[%s3 + $0x30] sm:$0xff]
      %v491 = vld [vmem:[%s3 + $0x38] sm:$0xff]
      %v492 = vadd.f32 %v484, %v450
      %v493 = vadd.f32 %v485, %v452
      %v494 = vadd.f32 %v486, %v454
      %v495 = vadd.f32 %v487, %v456
      %v496 = vadd.f32 %v488, %v460
      %v497 = vadd.f32 %v489, %v462
      %v498 = vadd.f32 %v490, %v464
      %v499 = vadd.f32 %v491, %v466
      %500 = vst [vmem:[%s3] sm:$0xff] %v492
      %501 = vst [vmem:[%s3 + $0x8] sm:$0xff] %v493
      %502 = vst [vmem:[%s3 + $0x10] sm:$0xff] %v494
      %503 = vst [vmem:[%s3 + $0x18] sm:$0xff] %v495
      %504 = vst [vmem:[%s3 + $0x20] sm:$0xff] %v496
      %505 = vst [vmem:[%s3 + $0x28] sm:$0xff] %v497
      %506 = vst [vmem:[%s3 + $0x30] sm:$0xff] %v498
      %507 = vst [vmem:[%s3 + $0x38] sm:$0xff] %v499
    $region25: #{forward.4} parent=1 // pred_fallthru
      _
    // Predicated region
    $region26: #{forward.4} parent=1 // pred_check
      %p508 = pneg %p468
    $region27: #{forward.4} parent=1 // pred_check_branch
      %510 = sbr.rel (%p508) target = $region29
    $region28: #{forward.4} parent=1 // pred_region
      %v511 = vld [vmem:[%s3] sm:$0xff]
      %v512 = vld [vmem:[%s3 + $0x8] sm:$0xff]
      %v513 = vld [vmem:[%s3 + $0x10] sm:$0xff]
      %v514 = vld [vmem:[%s3 + $0x18] sm:$0xff]
      %v515 = vld [vmem:[%s3 + $0x20] sm:$0xff]
      %v516 = vld [vmem:[%s3 + $0x28] sm:$0xff]
      %v517 = vld [vmem:[%s3 + $0x30] sm:$0xff]
      %v518 = vld [vmem:[%s3 + $0x38] sm:$0xff]
      %v519 = vld [vmem:[%s2] sm:$0x3]
      %v521 = vlaneseq
      %v522 = vshrl.u32 %v521, 7
      %v523 = vsub.s32 0, %v522
      %v524 = vrot.slane %v519, %v523
      %v525 = vlaneseq
      %v526 = vshrl.u32 %v525, 7
      %v527 = vsub.s32 1, %v526
      %v528 = vrot.slane %v519, %v527
      %v531 = vadd.f32 %v511, %v524
      %v532 = vadd.f32 %v512, %v528
      %v533 = vadd.f32 %v513, %v524
      %v534 = vadd.f32 %v514, %v528
      %v535 = vadd.f32 %v515, %v524
      %v536 = vadd.f32 %v516, %v528
      %v537 = vadd.f32 %v517, %v524
      %v538 = vadd.f32 %v518, %v528
      %v539 = vmax.f32 %v531, 0.0
      %v540 = vmax.f32 %v532, 0.0
      %v541 = vmax.f32 %v533, 0.0
      %v542 = vmax.f32 %v534, 0.0
      %v543 = vmax.f32 %v535, 0.0
      %v544 = vmax.f32 %v536, 0.0
      %v545 = vmax.f32 %v537, 0.0
      %v546 = vmax.f32 %v538, 0.0
      %547 = vst [vmem:[%s3] sm:$0xff] %v539
      %548 = vst [vmem:[%s3 + $0x8] sm:$0xff] %v540
      %549 = vst [vmem:[%s3 + $0x10] sm:$0xff] %v541
      %550 = vst [vmem:[%s3 + $0x18] sm:$0xff] %v542
      %551 = vst [vmem:[%s3 + $0x20] sm:$0xff] %v543
      %552 = vst [vmem:[%s3 + $0x28] sm:$0xff] %v544
      %553 = vst [vmem:[%s3 + $0x30] sm:$0xff] %v545
      %554 = vst [vmem:[%s3 + $0x38] sm:$0xff] %v546
    $region29: #{forward.4} parent=1 // pred_fallthru
      _
    // Predicated region
    $region30: #{forward.4} parent=1 // pred_check
      _
    $region31: #{forward.4} parent=1 // pred_check_branch
      %556 = sbr.rel (0) target = $region33
    $region32: #{forward.4} parent=1 // pred_region
      _
    $region33: #{forward.4} parent=1 // pred_fallthru
      _
    // Predicated region
    $region34: #{forward.4} parent=1 // pred_check
      _
    $region35: #{forward.4} parent=1 // pred_check_branch
      %558 = sbr.rel (0) target = $region37
    $region36: #{forward.4} parent=1 // pred_region
      _
    $region37: #{forward.4} parent=1 // pred_fallthru
      _
    %559 = vsyncpa [#allocation3], 1

// kernel: forward.6
$region0: #{forward.6}
  #allocation0 [shape = 'u32[]', space=smem, size = 0x4, offset = 0x4, fixed_abs, tag = 'smem constant byte address 0x4 - core index']
  #allocation1 [shape = 'u32[144,128]{1,0:T(1,128)}', space=vmem, size = 0x12000, scoped, tag = 'internal scratch']
  %s0 = inlined_call_operand.vmem [shape: bf16[32,256], index: 0, kind: input, shape index: {}]
  %s1 = inlined_call_operand.vmem [shape: bf16[1,1,256,128], index: 1, kind: input, shape index: {}]
  %s2 = inlined_call_operand.vmem [shape: f32[1,128], index: 2, kind: input, shape index: {}]
  %s3 = inlined_call_operand.vmem [shape: f32[32,128], index: 3, kind: output, shape index: {}]
  %s4 = sld [smem:[#allocation0]]
  $region34: #{forward.6} parent=0
    _
  %s6 = ssub.s32 1, %s4
  %s7 = scalar_select 0, %s6, %s4
  // Predicated region
  $region2: #{forward.6} parent=0 // pred_check
    _
  $region3: #{forward.6} parent=0 // pred_check_branch
    %9 = sbr.rel (0) target = $region5
  $region4: #{forward.6} parent=0 // pred_region
    _
  $region5: #{forward.6} parent=0 // pred_fallthru
    _
  // Predicated region
  $region6: #{forward.6} parent=0 // pred_check
    _
  $region7: #{forward.6} parent=0 // pred_check_branch
    %11 = sbr.rel (0) target = $region9
  $region8: #{forward.6} parent=0 // pred_region
    _
  $region9: #{forward.6} parent=0 // pred_fallthru
    _
  // Predicated region
  $region10: #{forward.6} parent=0 // pred_check
    _
  $region11: #{forward.6} parent=0 // pred_check_branch
    %13 = sbr.rel (0) target = $region13
  $region12: #{forward.6} parent=0 // pred_region
    _
  $region13: #{forward.6} parent=0 // pred_fallthru
    _
  %s15 = smul.u32 0, 256
  %s16 = sshra.s32 %s15, 7
  %s17 = sand.u32 %s15, 127
  %s18 = smul.addr %s16, 4
  %s19 = scalar_lea.vmem %s0, %s18
  %v20 = vld [vmem:[%s19] sm:$0xff]
  %v21 = vld [vmem:[%s19 + $0x8] sm:$0xff]
  %v22 = vld [vmem:[%s19 + $0x10] sm:$0xff]
  %v23 = vld [vmem:[%s19 + $0x18] sm:$0xff]
  %v24 = vld [vmem:[%s1] sm:$0xf]
  %v25 = vld [vmem:[%s1 + $0x4] sm:$0xf]
  %v26 = vld [vmem:[%s1 + $0x8] sm:$0xf]
  %v27 = vld [vmem:[%s1 + $0xc] sm:$0xf]
  %v28 = vld [vmem:[%s1 + $0x10] sm:$0xf]
  %v29 = vld [vmem:[%s1 + $0x14] sm:$0xf]
  %v30 = vld [vmem:[%s1 + $0x18] sm:$0xf]
  %v31 = vld [vmem:[%s1 + $0x1c] sm:$0xf]
  %v32 = vld [vmem:[%s1 + $0x20] sm:$0xf]
  %v33 = vld [vmem:[%s1 + $0x24] sm:$0xf]
  %v34 = vld [vmem:[%s1 + $0x28] sm:$0xf]
  %v35 = vld [vmem:[%s1 + $0x2c] sm:$0xf]
  %v36 = vld [vmem:[%s1 + $0x30] sm:$0xf]
  %v37 = vld [vmem:[%s1 + $0x34] sm:$0xf]
  %v38 = vld [vmem:[%s1 + $0x38] sm:$0xf]
  %v39 = vld [vmem:[%s1 + $0x3c] sm:$0xf]
  %v40 = vld [vmem:[%s1 + $0x40] sm:$0xf]
  %v41 = vld [vmem:[%s1 + $0x44] sm:$0xf]
  %v42 = vld [vmem:[%s1 + $0x48] sm:$0xf]
  %v43 = vld [vmem:[%s1 + $0x4c] sm:$0xf]
  %v44 = vld [vmem:[%s1 + $0x50] sm:$0xf]
  %v45 = vld [vmem:[%s1 + $0x54] sm:$0xf]
  %v46 = vld [vmem:[%s1 + $0x58] sm:$0xf]
  %v47 = vld [vmem:[%s1 + $0x5c] sm:$0xf]
  %v48 = vld [vmem:[%s1 + $0x60] sm:$0xf]
  %v49 = vld [vmem:[%s1 + $0x64] sm:$0xf]
  %v50 = vld [vmem:[%s1 + $0x68] sm:$0xf]
  %v51 = vld [vmem:[%s1 + $0x6c] sm:$0xf]
  %v52 = vld [vmem:[%s1 + $0x70] sm:$0xf]
  %v53 = vld [vmem:[%s1 + $0x74] sm:$0xf]
  %v54 = vld [vmem:[%s1 + $0x78] sm:$0xf]
  %v55 = vld [vmem:[%s1 + $0x7c] sm:$0xf]
  %v60 = vunpack.c.l.b16 %v20
  %v61 = vunpack.c.h.b16 %v20
  %v62 = vunpack.c.l.b16 %v21
  %v63 = vunpack.c.h.b16 %v21
  %v64 = vunpack.c.l.b16 %v22
  %v65 = vunpack.c.h.b16 %v22
  %v66 = vunpack.c.l.b16 %v23
  %v67 = vunpack.c.h.b16 %v23
  %v68 = vpack.c.b16 %v62, %v60
  %v69 = vpack.c.b16 %v63, %v61
  %v70 = vpack.c.b16 %v66, %v64
  %v71 = vpack.c.b16 %v67, %v65
  %v108 = vunpack.c.l.b16 %v24
  %v109 = vunpack.c.l.b16 %v25
  %v110 = vunpack.c.l.b16 %v26
  %v111 = vunpack.c.l.b16 %v27
  %v112 = vunpack.c.l.b16 %v28
  %v113 = vunpack.c.l.b16 %v29
  %v114 = vunpack.c.l.b16 %v30
  %v115 = vunpack.c.l.b16 %v31
  %v116 = vunpack.c.l.b16 %v32
  %v117 = vunpack.c.l.b16 %v33
  %v118 = vunpack.c.l.b16 %v34
  %v119 = vunpack.c.l.b16 %v35
  %v120 = vunpack.c.l.b16 %v36
  %v121 = vunpack.c.l.b16 %v37
  %v122 = vunpack.c.l.b16 %v38
  %v123 = vunpack.c.l.b16 %v39
  %v124 = vunpack.c.l.b16 %v40
  %v125 = vunpack.c.l.b16 %v41
  %v126 = vunpack.c.l.b16 %v42
  %v127 = vunpack.c.l.b16 %v43
  %v128 = vunpack.c.l.b16 %v44
  %v129 = vunpack.c.l.b16 %v45
  %v130 = vunpack.c.l.b16 %v46
  %v131 = vunpack.c.l.b16 %v47
  %v132 = vunpack.c.l.b16 %v48
  %v133 = vunpack.c.l.b16 %v49
  %v134 = vunpack.c.l.b16 %v50
  %v135 = vunpack.c.l.b16 %v51
  %v136 = vunpack.c.l.b16 %v52
  %v137 = vunpack.c.l.b16 %v53
  %v138 = vunpack.c.l.b16 %v54
  %v139 = vunpack.c.l.b16 %v55
  %v140 = vpack.c.b16 %v109, %v108
  %v141 = vpack.c.b16 %v111, %v110
  %v142 = vpack.c.b16 %v113, %v112
  %v143 = vpack.c.b16 %v115, %v114
  %v144 = vpack.c.b16 %v117, %v116
  %v145 = vpack.c.b16 %v119, %v118
  %v146 = vpack.c.b16 %v121, %v120
  %v147 = vpack.c.b16 %v123, %v122
  %v148 = vpack.c.b16 %v125, %v124
  %v149 = vpack.c.b16 %v127, %v126
  %v150 = vpack.c.b16 %v129, %v128
  %v151 = vpack.c.b16 %v131, %v130
  %v152 = vpack.c.b16 %v133, %v132
  %v153 = vpack.c.b16 %v135, %v134
  %v154 = vpack.c.b16 %v137, %v136
  %v155 = vpack.c.b16 %v139, %v138
  %172 = vmatprep.subr.bf16.mxu0 0
  %173 = vmatpush1.bf16.msra.mxu0 %v147
  %174 = vmatprep.subr.bf16.mxu0 0
  %175 = vmatpush1.bf16.msra.mxu0 %v146
  %176 = vmatprep.subr.bf16.mxu0 0
  %177 = vmatpush1.bf16.msra.mxu0 %v145
  %178 = vmatprep.subr.bf16.mxu0 0
  %179 = vmatpush1.bf16.msra.mxu0 %v144
  %180 = vmatprep.subr.bf16.mxu0 0
  %181 = vmatpush1.bf16.msra.mxu0 %v143
  %182 = vmatprep.subr.bf16.mxu0 0
  %183 = vmatpush1.bf16.msra.mxu0 %v142
  %184 = vmatprep.subr.bf16.mxu0 0
  %185 = vmatpush1.bf16.msra.mxu0 %v141
  %186 = vmatprep.subr.bf16.mxu0 0
  %187 = vmatpush1.bf16.msra.mxu0 %v140
  %188 = vmatprep.subr.bf16.mxu0 0
  %189 = vmatpush2.bf16.msra.mxu0 %v155
  %190 = vmatprep.subr.bf16.mxu0 0
  %191 = vmatpush2.bf16.msra.mxu0 %v154
  %192 = vmatprep.subr.bf16.mxu0 0
  %193 = vmatpush2.bf16.msra.mxu0 %v153
  %194 = vmatprep.subr.bf16.mxu0 0
  %195 = vmatpush2.bf16.msra.mxu0 %v152
  %196 = vmatprep.subr.bf16.mxu0 0
  %197 = vmatpush2.bf16.msra.mxu0 %v151
  %198 = vmatprep.subr.bf16.mxu0 0
  %199 = vmatpush2.bf16.msra.mxu0 %v150
  %200 = vmatprep.subr.bf16.mxu0 0
  %201 = vmatpush2.bf16.msra.mxu0 %v149
  %202 = vmatprep.subr.bf16.mxu0 0
  %203 = vmatpush2.bf16.msra.mxu0 %v148
  %204 = vmatprep.mubr.bf16.mxu0 %v69
  %205 = vmatmul.mubr.bf16.gmra.mxu0 %v68
  %v206 = vpop.f32.mrf.mxu0
  %v207 = vadd.f32 0.0, %v206
  %v208 = vpop.f32.mrf.mxu0
  %v209 = vpop.f32.mrf.mxu0
  %v210 = vadd.f32 0.0, %v209
  %v211 = vpop.f32.mrf.mxu0
  %212 = vmatprep.mubr.bf16.mxu0 %v71
  %213 = vmatmul.mubr.bf16.gmra.mxu0 %v70
  %v214 = vpop.f32.mrf.mxu0
  %v215 = vadd.f32 0.0, %v214
  %v216 = vpop.f32.mrf.mxu0
  %v217 = vpop.f32.mrf.mxu0
  %v218 = vadd.f32 0.0, %v217
  %v219 = vpop.f32.mrf.mxu0
  %220 = vdwg.mxu0
  %p221 = scmp.eq.s32.totalorder 0, 0
  // Predicated region
  $region14: #{forward.6} parent=0 // pred_check
    %p222 = pneg %p221
  $region15: #{forward.6} parent=0 // pred_check_branch
    %224 = sbr.rel (%p222) target = $region17
  $region16: #{forward.6} parent=0 // pred_region
    %225 = vst [vmem:[%s3] sm:$0xff] %v207
    %226 = vst [vmem:[%s3 + $0x8] sm:$0xff] %v210
    %227 = vst [vmem:[%s3 + $0x10] sm:$0xff] %v215
    %228 = vst [vmem:[%s3 + $0x18] sm:$0xff] %v218
  $region17: #{forward.6} parent=0 // pred_fallthru
    _
  %p229 = scmp.gt.s32.totalorder 0, 0
  // Predicated region
  $region18: #{forward.6} parent=0 // pred_check
    %p230 = pneg %p229
  $region19: #{forward.6} parent=0 // pred_check_branch
    %232 = sbr.rel (%p230) target = $region21
  $region20: #{forward.6} parent=0 // pred_region
    %v233 = vld [vmem:[%s3] sm:$0xff]
    %v234 = vld [vmem:[%s3 + $0x8] sm:$0xff]
    %v235 = vld [vmem:[%s3 + $0x10] sm:$0xff]
    %v236 = vld [vmem:[%s3 + $0x18] sm:$0xff]
    %v237 = vadd.f32 %v233, %v207
    %v238 = vadd.f32 %v234, %v210
    %v239 = vadd.f32 %v235, %v215
    %v240 = vadd.f32 %v236, %v218
    %241 = vst [vmem:[%s3] sm:$0xff] %v237
    %242 = vst [vmem:[%s3 + $0x8] sm:$0xff] %v238
    %243 = vst [vmem:[%s3 + $0x10] sm:$0xff] %v239
    %244 = vst [vmem:[%s3 + $0x18] sm:$0xff] %v240
  $region21: #{forward.6} parent=0 // pred_fallthru
    _
  // Predicated region
  $region22: #{forward.6} parent=0 // pred_check
    %p245 = pneg %p221
  $region23: #{forward.6} parent=0 // pred_check_branch
    %247 = sbr.rel (%p245) target = $region25
  $region24: #{forward.6} parent=0 // pred_region
    %v248 = vld [vmem:[%s3] sm:$0xff]
    %v249 = vld [vmem:[%s3 + $0x8] sm:$0xff]
    %v250 = vld [vmem:[%s3 + $0x10] sm:$0xff]
    %v251 = vld [vmem:[%s3 + $0x18] sm:$0xff]
    %v252 = vld [vmem:[%s2] sm:$0x1]
    %v254 = vlaneseq
    %v255 = vshrl.u32 %v254, 7
    %v256 = vsub.s32 0, %v255
    %v257 = vrot.slane %v252, %v256
    %v259 = vadd.f32 %v248, %v257
    %v260 = vadd.f32 %v249, %v257
    %v261 = vadd.f32 %v250, %v257
    %v262 = vadd.f32 %v251, %v257
    %v263 = vmax.f32 %v259, 0.0
    %v264 = vmax.f32 %v260, 0.0
    %v265 = vmax.f32 %v261, 0.0
    %v266 = vmax.f32 %v262, 0.0
    %267 = vst [vmem:[%s3] sm:$0xff] %v263
    %268 = vst [vmem:[%s3 + $0x8] sm:$0xff] %v264
    %269 = vst [vmem:[%s3 + $0x10] sm:$0xff] %v265
    %270 = vst [vmem:[%s3 + $0x18] sm:$0xff] %v266
  $region25: #{forward.6} parent=0 // pred_fallthru
    _
  // Predicated region
  $region26: #{forward.6} parent=0 // pred_check
    _
  $region27: #{forward.6} parent=0 // pred_check_branch
    %272 = sbr.rel (0) target = $region29
  $region28: #{forward.6} parent=0 // pred_region
    _
  $region29: #{forward.6} parent=0 // pred_fallthru
    _
  // Predicated region
  $region30: #{forward.6} parent=0 // pred_check
    _
  $region31: #{forward.6} parent=0 // pred_check_branch
    %274 = sbr.rel (0) target = $region33
  $region32: #{forward.6} parent=0 // pred_region
    _
  $region33: #{forward.6} parent=0 // pred_fallthru
    _

// kernel: forward.7
$region0: #{forward.7}
  #allocation0 [shape = 'u32[]', space=smem, size = 0x4, offset = 0x4, fixed_abs, tag = 'smem constant byte address 0x4 - core index']
  #allocation1 [shape = 'u32[144,128]{1,0:T(1,128)}', space=vmem, size = 0x12000, scoped, tag = 'internal scratch']
  %s0 = inlined_call_operand.vmem [shape: bf16[32,128], index: 0, kind: input, shape index: {}]
  %s1 = inlined_call_operand.vmem [shape: bf16[1,1,128,128], index: 1, kind: input, shape index: {}]
  %s2 = inlined_call_operand.vmem [shape: f32[1,128], index: 2, kind: input, shape index: {}]
  %s3 = inlined_call_operand.vmem [shape: f32[32,128], index: 3, kind: output, shape index: {}]
  %s4 = sld [smem:[#allocation0]]
  $region34: #{forward.7} parent=0
    _
  %s6 = ssub.s32 1, %s4
  %s7 = scalar_select 0, %s6, %s4
  // Predicated region
  $region2: #{forward.7} parent=0 // pred_check
    _
  $region3: #{forward.7} parent=0 // pred_check_branch
    %9 = sbr.rel (0) target = $region5
  $region4: #{forward.7} parent=0 // pred_region
    _
  $region5: #{forward.7} parent=0 // pred_fallthru
    _
  // Predicated region
  $region6: #{forward.7} parent=0 // pred_check
    _
  $region7: #{forward.7} parent=0 // pred_check_branch
    %11 = sbr.rel (0) target = $region9
  $region8: #{forward.7} parent=0 // pred_region
    _
  $region9: #{forward.7} parent=0 // pred_fallthru
    _
  // Predicated region
  $region10: #{forward.7} parent=0 // pred_check
    _
  $region11: #{forward.7} parent=0 // pred_check_branch
    %13 = sbr.rel (0) target = $region13
  $region12: #{forward.7} parent=0 // pred_region
    _
  $region13: #{forward.7} parent=0 // pred_fallthru
    _
  %s15 = smul.u32 0, 128
  %s16 = sshra.s32 %s15, 7
  %s17 = sand.u32 %s15, 127
  %s18 = smul.addr %s16, 4
  %s19 = scalar_lea.vmem %s0, %s18
  %v20 = vld [vmem:[%s19] sm:$0xf]
  %v21 = vld [vmem:[%s19 + $0x4] sm:$0xf]
  %v22 = vld [vmem:[%s19 + $0x8] sm:$0xf]
  %v23 = vld [vmem:[%s19 + $0xc] sm:$0xf]
  %v24 = vld [vmem:[%s1] sm:$0xf]
  %v25 = vld [vmem:[%s1 + $0x4] sm:$0xf]
  %v26 = vld [vmem:[%s1 + $0x8] sm:$0xf]
  %v27 = vld [vmem:[%s1 + $0xc] sm:$0xf]
  %v28 = vld [vmem:[%s1 + $0x10] sm:$0xf]
  %v29 = vld [vmem:[%s1 + $0x14] sm:$0xf]
  %v30 = vld [vmem:[%s1 + $0x18] sm:$0xf]
  %v31 = vld [vmem:[%s1 + $0x1c] sm:$0xf]
  %v32 = vld [vmem:[%s1 + $0x20] sm:$0xf]
  %v33 = vld [vmem:[%s1 + $0x24] sm:$0xf]
  %v34 = vld [vmem:[%s1 + $0x28] sm:$0xf]
  %v35 = vld [vmem:[%s1 + $0x2c] sm:$0xf]
  %v36 = vld [vmem:[%s1 + $0x30] sm:$0xf]
  %v37 = vld [vmem:[%s1 + $0x34] sm:$0xf]
  %v38 = vld [vmem:[%s1 + $0x38] sm:$0xf]
  %v39 = vld [vmem:[%s1 + $0x3c] sm:$0xf]
  %v44 = vunpack.c.l.b16 %v20
  %v45 = vunpack.c.l.b16 %v21
  %v46 = vunpack.c.l.b16 %v22
  %v47 = vunpack.c.l.b16 %v23
  %v48 = vpack.c.b16 %v45, %v44
  %v49 = vpack.c.b16 %v47, %v46
  %v68 = vunpack.c.l.b16 %v24
  %v69 = vunpack.c.l.b16 %v25
  %v70 = vunpack.c.l.b16 %v26
  %v71 = vunpack.c.l.b16 %v27
  %v72 = vunpack.c.l.b16 %v28
  %v73 = vunpack.c.l.b16 %v29
  %v74 = vunpack.c.l.b16 %v30
  %v75 = vunpack.c.l.b16 %v31
  %v76 = vunpack.c.l.b16 %v32
  %v77 = vunpack.c.l.b16 %v33
  %v78 = vunpack.c.l.b16 %v34
  %v79 = vunpack.c.l.b16 %v35
  %v80 = vunpack.c.l.b16 %v36
  %v81 = vunpack.c.l.b16 %v37
  %v82 = vunpack.c.l.b16 %v38
  %v83 = vunpack.c.l.b16 %v39
  %v84 = vpack.c.b16 %v69, %v68
  %v85 = vpack.c.b16 %v71, %v70
  %v86 = vpack.c.b16 %v73, %v72
  %v87 = vpack.c.b16 %v75, %v74
  %v88 = vpack.c.b16 %v77, %v76
  %v89 = vpack.c.b16 %v79, %v78
  %v90 = vpack.c.b16 %v81, %v80
  %v91 = vpack.c.b16 %v83, %v82
  %100 = vmatprep.subr.bf16.mxu0 0
  %101 = vmatpush1.bf16.msra.mxu0 %v91
  %102 = vmatprep.subr.bf16.mxu0 0
  %103 = vmatpush1.bf16.msra.mxu0 %v90
  %104 = vmatprep.subr.bf16.mxu0 0
  %105 = vmatpush1.bf16.msra.mxu0 %v89
  %106 = vmatprep.subr.bf16.mxu0 0
  %107 = vmatpush1.bf16.msra.mxu0 %v88
  %108 = vmatprep.subr.bf16.mxu0 0
  %109 = vmatpush1.bf16.msra.mxu0 %v87
  %110 = vmatprep.subr.bf16.mxu0 0
  %111 = vmatpush1.bf16.msra.mxu0 %v86
  %112 = vmatprep.subr.bf16.mxu0 0
  %113 = vmatpush1.bf16.msra.mxu0 %v85
  %114 = vmatprep.subr.bf16.mxu0 0
  %115 = vmatpush1.bf16.msra.mxu0 %v84
  %116 = vmatprep.subr.bf16.mxu0 0
  %117 = vmatpush2.bf16.msra.mxu0 0
  %118 = vmatprep.subr.bf16.mxu0 0
  %119 = vmatpush2.bf16.msra.mxu0 0
  %120 = vmatprep.subr.bf16.mxu0 0
  %121 = vmatpush2.bf16.msra.mxu0 0
  %122 = vmatprep.subr.bf16.mxu0 0
  %123 = vmatpush2.bf16.msra.mxu0 0
  %124 = vmatprep.subr.bf16.mxu0 0
  %125 = vmatpush2.bf16.msra.mxu0 0
  %126 = vmatprep.subr.bf16.mxu0 0
  %127 = vmatpush2.bf16.msra.mxu0 0
  %128 = vmatprep.subr.bf16.mxu0 0
  %129 = vmatpush2.bf16.msra.mxu0 0
  %130 = vmatprep.subr.bf16.mxu0 0
  %131 = vmatpush2.bf16.msra.mxu0 0
  %132 = vmatprep.mubr.bf16.mxu0 0
  %133 = vmatmul.mubr.bf16.gmra.mxu0 %v48
  %v134 = vpop.f32.mrf.mxu0
  %v135 = vadd.f32 0.0, %v134
  %v136 = vpop.f32.mrf.mxu0
  %v137 = vpop.f32.mrf.mxu0
  %v138 = vadd.f32 0.0, %v137
  %v139 = vpop.f32.mrf.mxu0
  %140 = vmatprep.mubr.bf16.mxu0 0
  %141 = vmatmul.mubr.bf16.gmra.mxu0 %v49
  %v142 = vpop.f32.mrf.mxu0
  %v143 = vadd.f32 0.0, %v142
  %v144 = vpop.f32.mrf.mxu0
  %v145 = vpop.f32.mrf.mxu0
  %v146 = vadd.f32 0.0, %v145
  %v147 = vpop.f32.mrf.mxu0
  %148 = vdwg.mxu0
  %p149 = scmp.eq.s32.totalorder 0, 0
  // Predicated region
  $region14: #{forward.7} parent=0 // pred_check
    %p150 = pneg %p149
  $region15: #{forward.7} parent=0 // pred_check_branch
    %152 = sbr.rel (%p150) target = $region17
  $region16: #{forward.7} parent=0 // pred_region
    %153 = vst [vmem:[%s3] sm:$0xff] %v135
    %154 = vst [vmem:[%s3 + $0x8] sm:$0xff] %v138
    %155 = vst [vmem:[%s3 + $0x10] sm:$0xff] %v143
    %156 = vst [vmem:[%s3 + $0x18] sm:$0xff] %v146
  $region17: #{forward.7} parent=0 // pred_fallthru
    _
  %p157 = scmp.gt.s32.totalorder 0, 0
  // Predicated region
  $region18: #{forward.7} parent=0 // pred_check
    %p158 = pneg %p157
  $region19: #{forward.7} parent=0 // pred_check_branch
    %160 = sbr.rel (%p158) target = $region21
  $region20: #{forward.7} parent=0 // pred_region
    %v161 = vld [vmem:[%s3] sm:$0xff]
    %v162 = vld [vmem:[%s3 + $0x8] sm:$0xff]
    %v163 = vld [vmem:[%s3 + $0x10] sm:$0xff]
    %v164 = vld [vmem:[%s3 + $0x18] sm:$0xff]
    %v165 = vadd.f32 %v161, %v135
    %v166 = vadd.f32 %v162, %v138
    %v167 = vadd.f32 %v163, %v143
    %v168 = vadd.f32 %v164, %v146
    %169 = vst [vmem:[%s3] sm:$0xff] %v165
    %170 = vst [vmem:[%s3 + $0x8] sm:$0xff] %v166
    %171 = vst [vmem:[%s3 + $0x10] sm:$0xff] %v167
    %172 = vst [vmem:[%s3 + $0x18] sm:$0xff] %v168
  $region21: #{forward.7} parent=0 // pred_fallthru
    _
  // Predicated region
  $region22: #{forward.7} parent=0 // pred_check
    %p173 = pneg %p149
  $region23: #{forward.7} parent=0 // pred_check_branch
    %175 = sbr.rel (%p173) target = $region25
  $region24: #{forward.7} parent=0 // pred_region
    %v176 = vld [vmem:[%s3] sm:$0xff]
    %v177 = vld [vmem:[%s3 + $0x8] sm:$0xff]
    %v178 = vld [vmem:[%s3 + $0x10] sm:$0xff]
    %v179 = vld [vmem:[%s3 + $0x18] sm:$0xff]
    %v180 = vld [vmem:[%s2] sm:$0x1]
    %v182 = vlaneseq
    %v183 = vshrl.u32 %v182, 7
    %v184 = vsub.s32 0, %v183
    %v185 = vrot.slane %v180, %v184
    %v187 = vadd.f32 %v176, %v185
    %v188 = vadd.f32 %v177, %v185
    %v189 = vadd.f32 %v178, %v185
    %v190 = vadd.f32 %v179, %v185
    %191 = vst [vmem:[%s3] sm:$0xff] %v187
    %192 = vst [vmem:[%s3 + $0x8] sm:$0xff] %v188
    %193 = vst [vmem:[%s3 + $0x10] sm:$0xff] %v189
    %194 = vst [vmem:[%s3 + $0x18] sm:$0xff] %v190
  $region25: #{forward.7} parent=0 // pred_fallthru
    _
  // Predicated region
  $region26: #{forward.7} parent=0 // pred_check
    _
  $region27: #{forward.7} parent=0 // pred_check_branch
    %196 = sbr.rel (0) target = $region29
  $region28: #{forward.7} parent=0 // pred_region
    _
  $region29: #{forward.7} parent=0 // pred_fallthru
    _
  // Predicated region
  $region30: #{forward.7} parent=0 // pred_check
    _
  $region31: #{forward.7} parent=0 // pred_check_branch
    %198 = sbr.rel (0) target = $region33
  $region32: #{forward.7} parent=0 // pred_region
    _
  $region33: #{forward.7} parent=0 // pred_fallthru
    _

// kernel: forward.5
$region0: #{forward.5}
  #allocation0 [shape = 'u32[]', space=smem, size = 0x4, offset = 0x4, fixed_abs, tag = 'smem constant byte address 0x4 - core index']
  #allocation1 [shape = 'u32[144,128]{1,0:T(1,128)}', space=vmem, size = 0x12000, scoped, tag = 'internal scratch']
  %s0 = inlined_call_operand.vmem [shape: bf16[32,256], index: 0, kind: input, shape index: {}]
  %s1 = inlined_call_operand.vmem [shape: bf16[1,1,256,256], index: 1, kind: input, shape index: {}]
  %s2 = inlined_call_operand.vmem [shape: f32[1,256], index: 2, kind: input, shape index: {}]
  %s3 = inlined_call_operand.vmem [shape: f32[32,256], index: 3, kind: output, shape index: {}]
  %s4 = sld [smem:[#allocation0]]
  $region34: #{forward.5} parent=0
    _
  %s6 = ssub.s32 1, %s4
  %s7 = scalar_select 0, %s6, %s4
  // Predicated region
  $region2: #{forward.5} parent=0 // pred_check
    _
  $region3: #{forward.5} parent=0 // pred_check_branch
    %9 = sbr.rel (0) target = $region5
  $region4: #{forward.5} parent=0 // pred_region
    _
  $region5: #{forward.5} parent=0 // pred_fallthru
    _
  // Predicated region
  $region6: #{forward.5} parent=0 // pred_check
    _
  $region7: #{forward.5} parent=0 // pred_check_branch
    %11 = sbr.rel (0) target = $region9
  $region8: #{forward.5} parent=0 // pred_region
    _
  $region9: #{forward.5} parent=0 // pred_fallthru
    _
  // Predicated region
  $region10: #{forward.5} parent=0 // pred_check
    _
  $region11: #{forward.5} parent=0 // pred_check_branch
    %13 = sbr.rel (0) target = $region13
  $region12: #{forward.5} parent=0 // pred_region
    _
  $region13: #{forward.5} parent=0 // pred_fallthru
    _
  %s14 = smul.u32 0, 256
  %s15 = sshra.s32 %s14, 7
  %s16 = sand.u32 %s14, 127
  %s17 = smul.addr %s15, 4
  %s18 = scalar_lea.vmem %s0, %s17
  %v19 = vld [vmem:[%s18] sm:$0xff]
  %v20 = vld [vmem:[%s18 + $0x8] sm:$0xff]
  %v21 = vld [vmem:[%s18 + $0x10] sm:$0xff]
  %v22 = vld [vmem:[%s18 + $0x18] sm:$0xff]
  %v23 = vld [vmem:[%s1] sm:$0xff]
  %v24 = vld [vmem:[%s1 + $0x8] sm:$0xff]
  %v25 = vld [vmem:[%s1 + $0x10] sm:$0xff]
  %v26 = vld [vmem:[%s1 + $0x18] sm:$0xff]
  %v27 = vld [vmem:[%s1 + $0x20] sm:$0xff]
  %v28 = vld [vmem:[%s1 + $0x28] sm:$0xff]
  %v29 = vld [vmem:[%s1 + $0x30] sm:$0xff]
  %v30 = vld [vmem:[%s1 + $0x38] sm:$0xff]
  %v31 = vld [vmem:[%s1 + $0x40] sm:$0xff]
  %v32 = vld [vmem:[%s1 + $0x48] sm:$0xff]
  %v33 = vld [vmem:[%s1 + $0x50] sm:$0xff]
  %v34 = vld [vmem:[%s1 + $0x58] sm:$0xff]
  %v35 = vld [vmem:[%s1 + $0x60] sm:$0xff]
  %v36 = vld [vmem:[%s1 + $0x68] sm:$0xff]
  %v37 = vld [vmem:[%s1 + $0x70] sm:$0xff]
  %v38 = vld [vmem:[%s1 + $0x78] sm:$0xff]
  %v39 = vld [vmem:[%s1 + $0x80] sm:$0xff]
  %v40 = vld [vmem:[%s1 + $0x88] sm:$0xff]
  %v41 = vld [vmem:[%s1 + $0x90] sm:$0xff]
  %v42 = vld [vmem:[%s1 + $0x98] sm:$0xff]
  %v43 = vld [vmem:[%s1 + $0xa0] sm:$0xff]
  %v44 = vld [vmem:[%s1 + $0xa8] sm:$0xff]
  %v45 = vld [vmem:[%s1 + $0xb0] sm:$0xff]
  %v46 = vld [vmem:[%s1 + $0xb8] sm:$0xff]
  %v47 = vld [vmem:[%s1 + $0xc0] sm:$0xff]
  %v48 = vld [vmem:[%s1 + $0xc8] sm:$0xff]
  %v49 = vld [vmem:[%s1 + $0xd0] sm:$0xff]
  %v50 = vld [vmem:[%s1 + $0xd8] sm:$0xff]
  %v51 = vld [vmem:[%s1 + $0xe0] sm:$0xff]
  %v52 = vld [vmem:[%s1 + $0xe8] sm:$0xff]
  %v53 = vld [vmem:[%s1 + $0xf0] sm:$0xff]
  %v54 = vld [vmem:[%s1 + $0xf8] sm:$0xff]
  %v59 = vunpack.c.l.b16 %v19
  %v60 = vunpack.c.h.b16 %v19
  %v61 = vunpack.c.l.b16 %v20
  %v62 = vunpack.c.h.b16 %v20
  %v63 = vunpack.c.l.b16 %v21
  %v64 = vunpack.c.h.b16 %v21
  %v65 = vunpack.c.l.b16 %v22
  %v66 = vunpack.c.h.b16 %v22
  %v67 = vpack.c.b16 %v61, %v59
  %v68 = vpack.c.b16 %v62, %v60
  %v69 = vpack.c.b16 %v65, %v63
  %v70 = vpack.c.b16 %v66, %v64
  %v107 = vunpack.c.l.b16 %v23
  %v108 = vunpack.c.h.b16 %v23
  %v109 = vunpack.c.l.b16 %v24
  %v110 = vunpack.c.h.b16 %v24
  %v111 = vunpack.c.l.b16 %v25
  %v112 = vunpack.c.h.b16 %v25
  %v113 = vunpack.c.l.b16 %v26
  %v114 = vunpack.c.h.b16 %v26
  %v115 = vunpack.c.l.b16 %v27
  %v116 = vunpack.c.h.b16 %v27
  %v117 = vunpack.c.l.b16 %v28
  %v118 = vunpack.c.h.b16 %v28
  %v119 = vunpack.c.l.b16 %v29
  %v120 = vunpack.c.h.b16 %v29
  %v121 = vunpack.c.l.b16 %v30
  %v122 = vunpack.c.h.b16 %v30
  %v123 = vunpack.c.l.b16 %v31
  %v124 = vunpack.c.h.b16 %v31
  %v125 = vunpack.c.l.b16 %v32
  %v126 = vunpack.c.h.b16 %v32
  %v127 = vunpack.c.l.b16 %v33
  %v128 = vunpack.c.h.b16 %v33
  %v129 = vunpack.c.l.b16 %v34
  %v130 = vunpack.c.h.b16 %v34
  %v131 = vunpack.c.l.b16 %v35
  %v132 = vunpack.c.h.b16 %v35
  %v133 = vunpack.c.l.b16 %v36
  %v134 = vunpack.c.h.b16 %v36
  %v135 = vunpack.c.l.b16 %v37
  %v136 = vunpack.c.h.b16 %v37
  %v137 = vunpack.c.l.b16 %v38
  %v138 = vunpack.c.h.b16 %v38
  %v139 = vunpack.c.l.b16 %v39
  %v140 = vunpack.c.h.b16 %v39
  %v141 = vunpack.c.l.b16 %v40
  %v142 = vunpack.c.h.b16 %v40
  %v143 = vunpack.c.l.b16 %v41
  %v144 = vunpack.c.h.b16 %v41
  %v145 = vunpack.c.l.b16 %v42
  %v146 = vunpack.c.h.b16 %v42
  %v147 = vunpack.c.l.b16 %v43
  %v148 = vunpack.c.h.b16 %v43
  %v149 = vunpack.c.l.b16 %v44
  %v150 = vunpack.c.h.b16 %v44
  %v151 = vunpack.c.l.b16 %v45
  %v152 = vunpack.c.h.b16 %v45
  %v153 = vunpack.c.l.b16 %v46
  %v154 = vunpack.c.h.b16 %v46
  %v155 = vunpack.c.l.b16 %v47
  %v156 = vunpack.c.h.b16 %v47
  %v157 = vunpack.c.l.b16 %v48
  %v158 = vunpack.c.h.b16 %v48
  %v159 = vunpack.c.l.b16 %v49
  %v160 = vunpack.c.h.b16 %v49
  %v161 = vunpack.c.l.b16 %v50
  %v162 = vunpack.c.h.b16 %v50
  %v163 = vunpack.c.l.b16 %v51
  %v164 = vunpack.c.h.b16 %v51
  %v165 = vunpack.c.l.b16 %v52
  %v166 = vunpack.c.h.b16 %v52
  %v167 = vunpack.c.l.b16 %v53
  %v168 = vunpack.c.h.b16 %v53
  %v169 = vunpack.c.l.b16 %v54
  %v170 = vunpack.c.h.b16 %v54
  %v171 = vpack.c.b16 %v109, %v107
  %v172 = vpack.c.b16 %v110, %v108
  %v173 = vpack.c.b16 %v113, %v111
  %v174 = vpack.c.b16 %v114, %v112
  %v175 = vpack.c.b16 %v117, %v115
  %v176 = vpack.c.b16 %v118, %v116
  %v177 = vpack.c.b16 %v121, %v119
  %v178 = vpack.c.b16 %v122, %v120
  %v179 = vpack.c.b16 %v125, %v123
  %v180 = vpack.c.b16 %v126, %v124
  %v181 = vpack.c.b16 %v129, %v127
  %v182 = vpack.c.b16 %v130, %v128
  %v183 = vpack.c.b16 %v133, %v131
  %v184 = vpack.c.b16 %v134, %v132
  %v185 = vpack.c.b16 %v137, %v135
  %v186 = vpack.c.b16 %v138, %v136
  %v187 = vpack.c.b16 %v141, %v139
  %v188 = vpack.c.b16 %v142, %v140
  %v189 = vpack.c.b16 %v145, %v143
  %v190 = vpack.c.b16 %v146, %v144
  %v191 = vpack.c.b16 %v149, %v147
  %v192 = vpack.c.b16 %v150, %v148
  %v193 = vpack.c.b16 %v153, %v151
  %v194 = vpack.c.b16 %v154, %v152
  %v195 = vpack.c.b16 %v157, %v155
  %v196 = vpack.c.b16 %v158, %v156
  %v197 = vpack.c.b16 %v161, %v159
  %v198 = vpack.c.b16 %v162, %v160
  %v199 = vpack.c.b16 %v165, %v163
  %v200 = vpack.c.b16 %v166, %v164
  %v201 = vpack.c.b16 %v169, %v167
  %v202 = vpack.c.b16 %v170, %v168
  %235 = vmatprep.subr.bf16.mxu0 %v186
  %236 = vmatpush1.bf16.msra.mxu0 %v185
  %237 = vmatprep.subr.bf16.mxu0 %v184
  %238 = vmatpush1.bf16.msra.mxu0 %v183
  %239 = vmatprep.subr.bf16.mxu0 %v182
  %240 = vmatpush1.bf16.msra.mxu0 %v181
  %241 = vmatprep.subr.bf16.mxu0 %v180
  %242 = vmatpush1.bf16.msra.mxu0 %v179
  %243 = vmatprep.subr.bf16.mxu0 %v178
  %244 = vmatpush1.bf16.msra.mxu0 %v177
  %245 = vmatprep.subr.bf16.mxu0 %v176
  %246 = vmatpush1.bf16.msra.mxu0 %v175
  %247 = vmatprep.subr.bf16.mxu0 %v174
  %248 = vmatpush1.bf16.msra.mxu0 %v173
  %249 = vmatprep.subr.bf16.mxu0 %v172
  %250 = vmatpush1.bf16.msra.mxu0 %v171
  %251 = vmatprep.subr.bf16.mxu0 %v202
  %252 = vmatpush2.bf16.msra.mxu0 %v201
  %253 = vmatprep.subr.bf16.mxu0 %v200
  %254 = vmatpush2.bf16.msra.mxu0 %v199
  %255 = vmatprep.subr.bf16.mxu0 %v198
  %256 = vmatpush2.bf16.msra.mxu0 %v197
  %257 = vmatprep.subr.bf16.mxu0 %v196
  %258 = vmatpush2.bf16.msra.mxu0 %v195
  %259 = vmatprep.subr.bf16.mxu0 %v194
  %260 = vmatpush2.bf16.msra.mxu0 %v193
  %261 = vmatprep.subr.bf16.mxu0 %v192
  %262 = vmatpush2.bf16.msra.mxu0 %v191
  %263 = vmatprep.subr.bf16.mxu0 %v190
  %264 = vmatpush2.bf16.msra.mxu0 %v189
  %265 = vmatprep.subr.bf16.mxu0 %v188
  %266 = vmatpush2.bf16.msra.mxu0 %v187
  %267 = vmatprep.mubr.bf16.mxu0 %v68
  %268 = vmatmul.mubr.bf16.gmra.mxu0 %v67
  %v269 = vpop.f32.mrf.mxu0
  %v270 = vadd.f32 0.0, %v269
  %v271 = vpop.f32.mrf.mxu0
  %v272 = vadd.f32 0.0, %v271
  %v273 = vpop.f32.mrf.mxu0
  %v274 = vadd.f32 0.0, %v273
  %v275 = vpop.f32.mrf.mxu0
  %v276 = vadd.f32 0.0, %v275
  %277 = vmatprep.mubr.bf16.mxu0 %v70
  %278 = vmatmul.mubr.bf16.gmra.mxu0 %v69
  %v279 = vpop.f32.mrf.mxu0
  %v280 = vadd.f32 0.0, %v279
  %v281 = vpop.f32.mrf.mxu0
  %v282 = vadd.f32 0.0, %v281
  %v283 = vpop.f32.mrf.mxu0
  %v284 = vadd.f32 0.0, %v283
  %v285 = vpop.f32.mrf.mxu0
  %v286 = vadd.f32 0.0, %v285
  %287 = vdwg.mxu0
  %p288 = scmp.eq.s32.totalorder 0, 0
  // Predicated region
  $region14: #{forward.5} parent=0 // pred_check
    %p289 = pneg %p288
  $region15: #{forward.5} parent=0 // pred_check_branch
    %291 = sbr.rel (%p289) target = $region17
  $region16: #{forward.5} parent=0 // pred_region
    %292 = vst [vmem:[%s3] sm:$0xff] %v270
    %293 = vst [vmem:[%s3 + $0x8] sm:$0xff] %v272
    %294 = vst [vmem:[%s3 + $0x10] sm:$0xff] %v274
    %295 = vst [vmem:[%s3 + $0x18] sm:$0xff] %v276
    %296 = vst [vmem:[%s3 + $0x20] sm:$0xff] %v280
    %297 = vst [vmem:[%s3 + $0x28] sm:$0xff] %v282
    %298 = vst [vmem:[%s3 + $0x30] sm:$0xff] %v284
    %299 = vst [vmem:[%s3 + $0x38] sm:$0xff] %v286
  $region17: #{forward.5} parent=0 // pred_fallthru
    _
  %p300 = scmp.gt.s32.totalorder 0, 0
  // Predicated region
  $region18: #{forward.5} parent=0 // pred_check
    %p301 = pneg %p300
  $region19: #{forward.5} parent=0 // pred_check_branch
    %303 = sbr.rel (%p301) target = $region21
  $region20: #{forward.5} parent=0 // pred_region
    %v304 = vld [vmem:[%s3] sm:$0xff]
    %v305 = vld [vmem:[%s3 + $0x8] sm:$0xff]
    %v306 = vld [vmem:[%s3 + $0x10] sm:$0xff]
    %v307 = vld [vmem:[%s3 + $0x18] sm:$0xff]
    %v308 = vld [vmem:[%s3 + $0x20] sm:$0xff]
    %v309 = vld [vmem:[%s3 + $0x28] sm:$0xff]
    %v310 = vld [vmem:[%s3 + $0x30] sm:$0xff]
    %v311 = vld [vmem:[%s3 + $0x38] sm:$0xff]
    %v312 = vadd.f32 %v304, %v270
    %v313 = vadd.f32 %v305, %v272
    %v314 = vadd.f32 %v306, %v274
    %v315 = vadd.f32 %v307, %v276
    %v316 = vadd.f32 %v308, %v280
    %v317 = vadd.f32 %v309, %v282
    %v318 = vadd.f32 %v310, %v284
    %v319 = vadd.f32 %v311, %v286
    %320 = vst [vmem:[%s3] sm:$0xff] %v312
    %321 = vst [vmem:[%s3 + $0x8] sm:$0xff] %v313
    %322 = vst [vmem:[%s3 + $0x10] sm:$0xff] %v314
    %323 = vst [vmem:[%s3 + $0x18] sm:$0xff] %v315
    %324 = vst [vmem:[%s3 + $0x20] sm:$0xff] %v316
    %325 = vst [vmem:[%s3 + $0x28] sm:$0xff] %v317
    %326 = vst [vmem:[%s3 + $0x30] sm:$0xff] %v318
    %327 = vst [vmem:[%s3 + $0x38] sm:$0xff] %v319
  $region21: #{forward.5} parent=0 // pred_fallthru
    _
  // Predicated region
  $region22: #{forward.5} parent=0 // pred_check
    %p328 = pneg %p288
  $region23: #{forward.5} parent=0 // pred_check_branch
    %330 = sbr.rel (%p328) target = $region25
  $region24: #{forward.5} parent=0 // pred_region
    %v331 = vld [vmem:[%s3] sm:$0xff]
    %v332 = vld [vmem:[%s3 + $0x8] sm:$0xff]
    %v333 = vld [vmem:[%s3 + $0x10] sm:$0xff]
    %v334 = vld [vmem:[%s3 + $0x18] sm:$0xff]
    %v335 = vld [vmem:[%s3 + $0x20] sm:$0xff]
    %v336 = vld [vmem:[%s3 + $0x28] sm:$0xff]
    %v337 = vld [vmem:[%s3 + $0x30] sm:$0xff]
    %v338 = vld [vmem:[%s3 + $0x38] sm:$0xff]
    %v339 = vld [vmem:[%s2] sm:$0x3]
    %v341 = vlaneseq
    %v342 = vshrl.u32 %v341, 7
    %v343 = vsub.s32 0, %v342
    %v344 = vrot.slane %v339, %v343
    %v345 = vlaneseq
    %v346 = vshrl.u32 %v345, 7
    %v347 = vsub.s32 1, %v346
    %v348 = vrot.slane %v339, %v347
    %v351 = vadd.f32 %v331, %v344
    %v352 = vadd.f32 %v332, %v348
    %v353 = vadd.f32 %v333, %v344
    %v354 = vadd.f32 %v334, %v348
    %v355 = vadd.f32 %v335, %v344
    %v356 = vadd.f32 %v336, %v348
    %v357 = vadd.f32 %v337, %v344
    %v358 = vadd.f32 %v338, %v348
    %v359 = vmax.f32 %v351, 0.0
    %v360 = vmax.f32 %v352, 0.0
    %v361 = vmax.f32 %v353, 0.0
    %v362 = vmax.f32 %v354, 0.0
    %v363 = vmax.f32 %v355, 0.0
    %v364 = vmax.f32 %v356, 0.0
    %v365 = vmax.f32 %v357, 0.0
    %v366 = vmax.f32 %v358, 0.0
    %367 = vst [vmem:[%s3] sm:$0xff] %v359
    %368 = vst [vmem:[%s3 + $0x8] sm:$0xff] %v360
    %369 = vst [vmem:[%s3 + $0x10] sm:$0xff] %v361
    %370 = vst [vmem:[%s3 + $0x18] sm:$0xff] %v362
    %371 = vst [vmem:[%s3 + $0x20] sm:$0xff] %v363
    %372 = vst [vmem:[%s3 + $0x28] sm:$0xff] %v364
    %373 = vst [vmem:[%s3 + $0x30] sm:$0xff] %v365
    %374 = vst [vmem:[%s3 + $0x38] sm:$0xff] %v366
  $region25: #{forward.5} parent=0 // pred_fallthru
    _
  // Predicated region
  $region26: #{forward.5} parent=0 // pred_check
    _
  $region27: #{forward.5} parent=0 // pred_check_branch
    %376 = sbr.rel (0) target = $region29
  $region28: #{forward.5} parent=0 // pred_region
    _
  $region29: #{forward.5} parent=0 // pred_fallthru
    _
  // Predicated region
  $region30: #{forward.5} parent=0 // pred_check
    _
  $region31: #{forward.5} parent=0 // pred_check_branch
    %378 = sbr.rel (0) target = $region33
  $region32: #{forward.5} parent=0 // pred_region
    _
  $region33: #{forward.5} parent=0 // pred_fallthru
    _

</llo_original>
